<compile_context>
chip_gen: v5e
topology: v5e:2x2
jax: 0.10.0
libtpu: 0.0.40
codegen_flags: <defaults>
</compile_context>

<pallas_src>
import functools
import math

import jax
import jax.numpy as jnp
from jax import lax
from jax.experimental import pallas as pl
from jax.experimental.pallas import tpu as pltpu


# ----------------------------------------------------------------------------
# Fused ResnetBlock kernel
# ----------------------------------------------------------------------------

def _resnet_block_kernel(x_ref, w1_ref, w2_ref, s1_ref, b1_ref, s2_ref, b2_ref,
                         *rest, k, stride, pad, w_in, identity_shortcut):
    """Fused pre-activation ResnetBlock on a (rt, W+2p, Cin_p) row tile.

    x_ref : (rt, W+2p, Cin_p)    bf16, time-pre-padded, channel-padded rows
    w1_ref: (k, Cin_p, Cout_p)   bf16 conv1 weights, one (Cin_p, Cout_p) per tap
    w2_ref: (k, Cout_p, Cout_p)  bf16 conv2 weights
    s1/b1 : (1, Cin_p)  f32      bn1 folded scale/bias
    s2/b2 : (1, Cout_p) f32      bn2 folded scale/bias
    rest  : [ws_ref,] o_ref, h2p_ref   (ws_ref only for the 1x1-conv shortcut)
    """
    if identity_shortcut:
        o_ref, h2p_ref = rest
        ws_ref = None
    else:
        ws_ref, o_ref, h2p_ref = rest

    rt, wp, cin = x_ref.shape
    _, wout2, cout = o_ref.shape
    wout1 = (wp - k) // stride + 1

    # ---- BN1 (eval, folded) + ReLU: f32 math --------------------------------
    x = x_ref[...].astype(jnp.float32)
    h = jnp.maximum(x * s1_ref[...][None] + b1_ref[...][None], 0.0)
    if pad > 0:
        # Conv2d zero-pads AFTER bn1+relu: re-zero the pre-padded time columns
        # (bias/relu made them nonzero) with a cheap VPU iota mask.
        t = lax.broadcasted_iota(jnp.int32, (1, wp, 1), 1)
        h = jnp.where(jnp.logical_and(t >= pad, t < pad + w_in), h, 0.0)
    hb = h.astype(jnp.bfloat16)                       # bf16 MXU operand

    # ---- conv1: k accumulated dots over sublane-shifted views ----------------
    span1 = stride * (wout1 - 1) + 1
    y1 = None
    for j in range(k):
        lhs = hb[:, j:j + span1:stride, :].reshape(rt * wout1, cin)
        d = jnp.dot(lhs, w1_ref[j], preferred_element_type=jnp.float32)
        y1 = d if y1 is None else y1 + d
    y1 = y1.reshape(rt, wout1, cout)

    # ---- BN2 + ReLU (Dropout p=0.2 is identity in eval) ----------------------
    h2 = jnp.maximum(y1 * s2_ref[...][None] + b2_ref[...][None], 0.0)

    # ---- conv2 input via zero-padded bf16 VMEM scratch (no concat copy) ------
    if pad > 0:
        zpad = jnp.zeros((rt, pad, cout), jnp.bfloat16)
        h2p_ref[:, :pad, :] = zpad
        h2p_ref[:, pad + wout1:, :] = zpad
    h2p_ref[:, pad:pad + wout1, :] = h2.astype(jnp.bfloat16)

    span2 = stride * (wout2 - 1) + 1
    y2 = None
    for j in range(k):
        if stride == 1:
            win = h2p_ref[:, j:j + span2, :]
        else:
            win = h2p_ref[...][:, j:j + span2:stride, :]
        d = jnp.dot(win.reshape(rt * wout2, cout), w2_ref[j],
                    preferred_element_type=jnp.float32)
        y2 = d if y2 is None else y2 + d
    y2 = y2.reshape(rt, wout2, cout)

    # ---- shortcut (identity or 1x1 conv, stride s, no padding) + residual ----
    xs = x[:, pad:pad + span2:stride, :]
    if identity_shortcut:
        y2 = y2 + xs
    else:
        sc = jnp.dot(xs.astype(jnp.bfloat16).reshape(rt * wout2, cin),
                     ws_ref[...], preferred_element_type=jnp.float32)
        y2 = y2 + sc.reshape(rt, wout2, cout)

    o_ref[...] = y2.astype(o_ref.dtype)


# ----------------------------------------------------------------------------
# Wrapper: layout / padding / weight folding / tiling policy
# ----------------------------------------------------------------------------

def _round_up(v, m):
    return (v + m - 1) // m * m


def _vmem_capacity_bytes():
    try:
        return int(pltpu.get_tpu_info().vmem_capacity_bytes)
    except Exception:
        return 64 * 1024 * 1024          # conservative (v7x per-core VMEM)


def _bn_fold(gamma, beta, mean, var, c_pad, eps=1e-5):
    s = gamma / jnp.sqrt(var + eps)
    b = beta - mean * s
    c = s.shape[0]
    s = jnp.pad(s, (0, c_pad - c), constant_values=1.0)
    b = jnp.pad(b, (0, c_pad - c))
    return (s.reshape(1, -1).astype(jnp.float32),
            b.reshape(1, -1).astype(jnp.float32))


def _fold_conv_weight(w, cin_pad, cout_pad):
    """(cout, cin, 1, k) PyTorch conv weight -> (k, cin_pad, cout_pad) bf16."""
    cout, cin, _, k = w.shape
    wt = jnp.transpose(w[:, :, 0, :], (2, 1, 0))              # (k, cin, cout)
    wt = jnp.pad(wt, ((0, 0), (0, cin_pad - cin), (0, cout_pad - cout)))
    return wt.astype(jnp.bfloat16)


def _per_row_vmem_bytes(wp, wp2, wout1, wout2, cin_p, cout_p):
    b = 2 * wp * cin_p * 2                 # double-buffered bf16 input block
    b += wp * cin_p * (4 + 4 + 2)          # x f32, h f32, hb bf16
    b += wout1 * cin_p * 2                 # per-tap lhs view (one live)
    b += wout1 * cout_p * (4 + 4)          # conv1 acc f32, h2 f32
    b += wp2 * cout_p * 2                  # padded conv2-input scratch (bf16)
    b += wout2 * cout_p * (2 + 4 + 4)      # conv2 view, acc f32, residual f32
    b += 2 * wout2 * cout_p * 2            # double-buffered bf16 output block
    return int(b * 1.25)                   # slack for relayout temporaries


def _pick_r_tile(R, per_row_bytes, live_budget_bytes):
    r_cap = max(1, int(live_budget_bytes) // max(int(per_row_bytes), 1))
    # >= 8 grid steps when R allows it (>= 4 per TensorCore on v7x megacore so
    # the auto-pipeline can prefetch block i+1 while computing i), even step
    # count so both cores get equal work, minimal dead-row padding.
    steps = max(8, pl.cdiv(R, r_cap))
    steps = min(steps, max(R, 1))
    steps = _round_up(steps, 2)
    r = pl.cdiv(R, steps)
    if r > 8:
        r = _round_up(r, 8)                # sublane-friendly for big tiles
    return max(1, min(r, max(R, 1)))


def resnet_block_pallas(x, params, *, kernel_size, stride, padding):
    """x: (N, Cin, H, W) float32 (PyTorch NCHW). Returns (N, Cout, H, W_out)."""
    N, Cin, H, W = x.shape
    Cout = params['conv1'].shape[0]
    k, s, p = kernel_size, stride, padding

    wout1 = (W + 2 * p - k) // s + 1
    wout2 = (wout1 + 2 * p - k) // s + 1
    wsc = (W - 1) // s + 1
    identity = params.get('shortcut') is None
    if identity:
        if Cin != Cout:
            raise ValueError("identity shortcut requires in_channels == out_channels")
        if s != 1:
            # PyTorch's nn.Sequential() identity shortcut does not stride.
            raise ValueError("identity shortcut requires stride == 1")
        if wout2 != W:
            raise ValueError("residual add shape mismatch for this (k, stride, pad)")
    elif wout2 != wsc:
        raise ValueError("residual add shape mismatch for this (k, stride, pad)")

    cin_p = _round_up(Cin, 128)
    cout_p = _round_up(Cout, 128)
    wp = W + 2 * p
    wp2 = wout1 + 2 * p
    R = N * H

    cap = _vmem_capacity_bytes()
    per_row = _per_row_vmem_bytes(wp, wp2, wout1, wout2, cin_p, cout_p)
    r_tile = _pick_r_tile(R, per_row, int(cap * 0.35))
    R_pad = _round_up(R, r_tile)
    vmem_limit = max(32 * 1024 * 1024, min(cap * 3 // 4, 100 * 1024 * 1024))

    # rows layout (R, time, channels): channels -> lanes, time -> sublanes.
    # bf16 so the layout pass and the kernel's input DMA move half the bytes.
    xr = jnp.transpose(x.astype(jnp.bfloat16), (0, 2, 3, 1)).reshape(R, W, Cin)
    xr = jnp.pad(xr, ((0, R_pad - R), (p, p), (0, cin_p - Cin)))

    w1m = _fold_conv_weight(params['conv1'], cin_p, cout_p)    # (k, cin_p, cout_p)
    w2m = _fold_conv_weight(params['conv2'], cout_p, cout_p)   # (k, cout_p, cout_p)
    s1, b1 = _bn_fold(*params['bn1'], cin_p)
    s2, b2 = _bn_fold(*params['bn2'], cout_p)

    # NOTE: weight/BN specs are grid-invariant; pl.Buffered(1) could reclaim
    # their double-buffer VMEM (~0.2 MiB here) — omitted for broad jax compat.
    args = [xr, w1m, w2m, s1, b1, s2, b2]
    in_specs = [
        pl.BlockSpec((r_tile, wp, cin_p), lambda i: (i, 0, 0)),
        pl.BlockSpec((k, cin_p, cout_p), lambda i: (0, 0, 0)),
        pl.BlockSpec((k, cout_p, cout_p), lambda i: (0, 0, 0)),
        pl.BlockSpec((1, cin_p), lambda i: (0, 0)),
        pl.BlockSpec((1, cin_p), lambda i: (0, 0)),
        pl.BlockSpec((1, cout_p), lambda i: (0, 0)),
        pl.BlockSpec((1, cout_p), lambda i: (0, 0)),
    ]
    if not identity:
        wsm = jnp.transpose(params['shortcut'][:, :, 0, 0], (1, 0))   # (Cin, Cout)
        wsm = jnp.pad(wsm, ((0, cin_p - Cin), (0, cout_p - Cout))).astype(jnp.bfloat16)
        args.append(wsm)
        in_specs.append(pl.BlockSpec((cin_p, cout_p), lambda i: (0, 0)))

    kernel = functools.partial(
        _resnet_block_kernel, k=k, stride=s, pad=p, w_in=W,
        identity_shortcut=identity)

    out = pl.pallas_call(
        kernel,
        out_shape=jax.ShapeDtypeStruct((R_pad, wout2, cout_p), jnp.bfloat16),
        grid=(R_pad // r_tile,),
        in_specs=in_specs,
        out_specs=pl.BlockSpec((r_tile, wout2, cout_p), lambda i: (i, 0, 0)),
        scratch_shapes=[pltpu.VMEM((r_tile, wp2, cout_p), jnp.bfloat16)],
        compiler_params=pltpu.CompilerParams(
            dimension_semantics=("parallel",),
            vmem_limit_bytes=int(vmem_limit)),
    )(*args)

    out = out[:R, :, :Cout].astype(jnp.float32).reshape(N, H, wout2, Cout)
    return jnp.transpose(out, (0, 3, 1, 2))                    # back to NCHW


# ----------------------------------------------------------------------------
# Pure-JAX reference (mirrors the PyTorch ResnetBlock forward, eval mode)
# ----------------------------------------------------------------------------

def _bn_eval(x, gamma, beta, mean, var, eps=1e-5):
    inv = gamma / jnp.sqrt(var + eps)
    return ((x - mean[None, :, None, None]) * inv[None, :, None, None]
            + beta[None, :, None, None])


def _conv_nchw(x, w, stride_w=1, pad_w=0):
    return lax.conv_general_dilated(
        x, w, window_strides=(1, stride_w),
        padding=((0, 0), (pad_w, pad_w)),
        dimension_numbers=('NCHW', 'OIHW', 'NCHW'),
        precision=lax.Precision.HIGHEST)


def resnet_block_ref(x, params, *, kernel_size, stride, padding):
    out = jax.nn.relu(_bn_eval(x, *params['bn1']))
    out = _conv_nchw(out, params['conv1'], stride, padding)
    out = jax.nn.relu(_bn_eval(out, *params['bn2']))
    # dropout(p=0.2) is identity in eval mode
    out = _conv_nchw(out, params['conv2'], stride, padding)
    if params.get('shortcut') is None:
        identity = x
    else:
        identity = _conv_nchw(x, params['shortcut'], stride, 0)
    return out + identity


# ----------------------------------------------------------------------------
# Deterministic synthetic parameters
# ----------------------------------------------------------------------------

def init_resnet_block_params(key, cin, cout, k):
    keys = jax.random.split(key, 11)

    def bn(k1, k2, k3, k4, c):
        gamma = jax.random.uniform(k1, (c,), jnp.float32, 0.5, 1.5)
        beta = 0.1 * jax.random.normal(k2, (c,), jnp.float32)
        mean = 0.1 * jax.random.normal(k3, (c,), jnp.float32)
        var = jax.random.uniform(k4, (c,), jnp.float32, 0.5, 1.5)
        return (gamma, beta, mean, var)

    params = {
        'bn1': bn(keys[0], keys[1], keys[2], keys[3], cin),
        'conv1': jax.random.normal(keys[4], (cout, cin, 1, k), jnp.float32)
                 / math.sqrt(cin * k),
        'bn2': bn(keys[5], keys[6], keys[7], keys[8], cout),
        'conv2': jax.random.normal(keys[9], (cout, cout, 1, k), jnp.float32)
                 / math.sqrt(cout * k),
    }
    if cin != cout:
        params['shortcut'] = (jax.random.normal(keys[10], (cout, cin, 1, 1),
                                                jnp.float32) / math.sqrt(cin))
    else:
        params['shortcut'] = None
    return params


def _check(out, ref, name):
    max_ref = float(jnp.max(jnp.abs(ref)))
    err = float(jnp.max(jnp.abs(out - ref)))
    # bf16 matmul operands + bf16 output: comfortably within 2e-2 of max|ref|.
    if not (err <= 2e-2 * max(1.0, max_ref)):
        raise AssertionError(f"{name} mismatch: max_abs_err={err}, max_abs_ref={max_ref}")


# ----------------------------------------------------------------------------
# Main
# ----------------------------------------------------------------------------

if __name__ == "__main__":
    key = jax.random.PRNGKey(0)
    k_p1, k_p2, k_x1, k_x2 = jax.random.split(key, 4)

    # Config 1: typical EEG-encoder usage (in == out channels, identity shortcut).
    N, C, H, W = 2, 32, 8, 24          # batch, channels, electrodes, time
    params1 = init_resnet_block_params(k_p1, C, C, 3)
    x1 = jax.random.normal(k_x1, (N, C, H, W), jnp.float32)
    out1 = jax.block_until_ready(
        resnet_block_pallas(x1, params1, kernel_size=3, stride=1, padding=1))
    assert out1.shape == (N, C, H, W), out1.shape
    ref1 = resnet_block_ref(x1, params1, kernel_size=3, stride=1, padding=1)
    _check(out1, ref1, "identity-shortcut block")

    # Config 2: channel-expanding block (1x1-conv shortcut).
    Cin2, Cout2 = 16, 32
    params2 = init_resnet_block_params(k_p2, Cin2, Cout2, 3)
    x2 = jax.random.normal(k_x2, (N, Cin2, H, W), jnp.float32)
    out2 = jax.block_until_ready(
        resnet_block_pallas(x2, params2, kernel_size=3, stride=1, padding=1))
    assert out2.shape == (N, Cout2, H, W), out2.shape
    ref2 = resnet_block_ref(x2, params2, kernel_size=3, stride=1, padding=1)
    _check(out2, ref2, "conv-shortcut block")

    print("KERNEL_OK")
</pallas_src>

<mosaic_0001>
module attributes {stable_mosaic.version = 11 : i64} {
  func.func @_resnet_block_kernel(%arg0: i32, %arg1: memref<2x26x128xbf16, #tpu.memory_space<vmem>>, %arg2: memref<3x128x128xbf16, #tpu.memory_space<vmem>>, %arg3: memref<3x128x128xbf16, #tpu.memory_space<vmem>>, %arg4: memref<1x128xf32, #tpu.memory_space<vmem>>, %arg5: memref<1x128xf32, #tpu.memory_space<vmem>>, %arg6: memref<1x128xf32, #tpu.memory_space<vmem>>, %arg7: memref<1x128xf32, #tpu.memory_space<vmem>>, %arg8: memref<2x24x128xbf16, #tpu.memory_space<vmem>>, %arg9: memref<2x26x128xbf16, #tpu.memory_space<vmem>>) attributes {dimension_semantics = [#tpu.dimension_semantics<parallel>], iteration_bounds = array<i64: 8>, scalar_prefetch = 0 : i64, scratch_operands = 1 : i64, tpu.core_type = #tpu.core_type<tc>, window_params = [{transform_indices = @transform_0, window_bounds = array<i64: 2, 26, 128>}, {pipeline_mode = #tpu.pipeline_mode<synchronous>, transform_indices = @transform_1, window_bounds = array<i64: 3, 128, 128>}, {pipeline_mode = #tpu.pipeline_mode<synchronous>, transform_indices = @transform_2, window_bounds = array<i64: 3, 128, 128>}, {pipeline_mode = #tpu.pipeline_mode<synchronous>, transform_indices = @transform_3, window_bounds = array<i64: 1, 128>}, {pipeline_mode = #tpu.pipeline_mode<synchronous>, transform_indices = @transform_4, window_bounds = array<i64: 1, 128>}, {pipeline_mode = #tpu.pipeline_mode<synchronous>, transform_indices = @transform_5, window_bounds = array<i64: 1, 128>}, {pipeline_mode = #tpu.pipeline_mode<synchronous>, transform_indices = @transform_6, window_bounds = array<i64: 1, 128>}, {transform_indices = @transform_7, window_bounds = array<i64: 2, 24, 128>}]} {
    %c0 = arith.constant 0 : index
    %c0_0 = arith.constant 0 : index
    %c0_1 = arith.constant 0 : index
    %0 = vector.load %arg1[%c0, %c0_0, %c0_1] : memref<2x26x128xbf16, #tpu.memory_space<vmem>>, vector<2x26x128xbf16>
    %1 = arith.extf %0 : vector<2x26x128xbf16> to vector<2x26x128xf32>
    %c0_2 = arith.constant 0 : index
    %c0_3 = arith.constant 0 : index
    %2 = vector.load %arg4[%c0_2, %c0_3] : memref<1x128xf32, #tpu.memory_space<vmem>>, vector<1x128xf32>
    %3 = vector.shape_cast %2 : vector<1x128xf32> to vector<1x1x128xf32>
    %4 = vector.broadcast %3 : vector<1x1x128xf32> to vector<2x26x128xf32>
    %5 = arith.mulf %1, %4 : vector<2x26x128xf32>
    %c0_4 = arith.constant 0 : index
    %c0_5 = arith.constant 0 : index
    %6 = vector.load %arg5[%c0_4, %c0_5] : memref<1x128xf32, #tpu.memory_space<vmem>>, vector<1x128xf32>
    %7 = vector.shape_cast %6 : vector<1x128xf32> to vector<1x1x128xf32>
    %8 = vector.broadcast %7 : vector<1x1x128xf32> to vector<2x26x128xf32>
    %9 = arith.addf %5, %8 : vector<2x26x128xf32>
    %cst = arith.constant 0.000000e+00 : f32
    %10 = vector.broadcast %cst : f32 to vector<2x26x128xf32>
    %11 = arith.maximumf %9, %10 : vector<2x26x128xf32>
    %12 = tpu.iota {dimensions = array<i32: 1>} : vector<1x26x1xi32>
    %c1_i32 = arith.constant 1 : i32
    %13 = vector.broadcast %c1_i32 : i32 to vector<1x26x1xi32>
    %14 = arith.cmpi sge, %12, %13 : vector<1x26x1xi32>
    %c25_i32 = arith.constant 25 : i32
    %15 = vector.broadcast %c25_i32 : i32 to vector<1x26x1xi32>
    %16 = arith.cmpi slt, %12, %15 : vector<1x26x1xi32>
    %17 = arith.andi %14, %16 : vector<1x26x1xi1>
    %cst_6 = arith.constant 0.000000e+00 : f32
    %18 = vector.shape_cast %17 : vector<1x26x1xi1> to vector<1x26x1xi1>
    %19 = vector.broadcast %18 : vector<1x26x1xi1> to vector<2x26x128xi1>
    %20 = vector.broadcast %cst_6 : f32 to vector<2x26x128xf32>
    %21 = arith.select %19, %11, %20 : vector<2x26x128xi1>, vector<2x26x128xf32>
    %22 = arith.truncf %21 : vector<2x26x128xf32> to vector<2x26x128xbf16>
    %23 = vector.extract_strided_slice %22 {offsets = [0, 0, 0], sizes = [2, 24, 128], strides = [1, 1, 1]} : vector<2x26x128xbf16> to vector<2x24x128xbf16>
    %24 = vector.shape_cast %23 : vector<2x24x128xbf16> to vector<48x128xbf16>
    %c0_7 = arith.constant 0 : index
    %c0_8 = arith.constant 0 : index
    %c0_9 = arith.constant 0 : index
    %25 = vector.load %arg2[%c0_7, %c0_8, %c0_9] : memref<3x128x128xbf16, #tpu.memory_space<vmem>>, vector<1x128x128xbf16>
    %26 = vector.shape_cast %25 : vector<1x128x128xbf16> to vector<128x128xbf16>
    %cst_10 = arith.constant dense<0.000000e+00> : vector<48x128xf32>
    %27 = tpu.matmul %24, %26, %cst_10 {dimension_numbers = #tpu.dot_dimension_numbers<[1], [0], [0], [1], [0, 0, 1, 1], [], []>} : vector<48x128xbf16>, vector<128x128xbf16>, vector<48x128xf32> -> vector<48x128xf32>
    %28 = vector.extract_strided_slice %22 {offsets = [0, 1, 0], sizes = [2, 24, 128], strides = [1, 1, 1]} : vector<2x26x128xbf16> to vector<2x24x128xbf16>
    %29 = vector.shape_cast %28 : vector<2x24x128xbf16> to vector<48x128xbf16>
    %c1 = arith.constant 1 : index
    %c0_11 = arith.constant 0 : index
    %c0_12 = arith.constant 0 : index
    %30 = vector.load %arg2[%c1, %c0_11, %c0_12] : memref<3x128x128xbf16, #tpu.memory_space<vmem>>, vector<1x128x128xbf16>
    %31 = vector.shape_cast %30 : vector<1x128x128xbf16> to vector<128x128xbf16>
    %cst_13 = arith.constant dense<0.000000e+00> : vector<48x128xf32>
    %32 = tpu.matmul %29, %31, %cst_13 {dimension_numbers = #tpu.dot_dimension_numbers<[1], [0], [0], [1], [0, 0, 1, 1], [], []>} : vector<48x128xbf16>, vector<128x128xbf16>, vector<48x128xf32> -> vector<48x128xf32>
    %33 = arith.addf %27, %32 : vector<48x128xf32>
    %34 = vector.extract_strided_slice %22 {offsets = [0, 2, 0], sizes = [2, 24, 128], strides = [1, 1, 1]} : vector<2x26x128xbf16> to vector<2x24x128xbf16>
    %35 = vector.shape_cast %34 : vector<2x24x128xbf16> to vector<48x128xbf16>
    %c2 = arith.constant 2 : index
    %c0_14 = arith.constant 0 : index
    %c0_15 = arith.constant 0 : index
    %36 = vector.load %arg2[%c2, %c0_14, %c0_15] : memref<3x128x128xbf16, #tpu.memory_space<vmem>>, vector<1x128x128xbf16>
    %37 = vector.shape_cast %36 : vector<1x128x128xbf16> to vector<128x128xbf16>
    %cst_16 = arith.constant dense<0.000000e+00> : vector<48x128xf32>
    %38 = tpu.matmul %35, %37, %cst_16 {dimension_numbers = #tpu.dot_dimension_numbers<[1], [0], [0], [1], [0, 0, 1, 1], [], []>} : vector<48x128xbf16>, vector<128x128xbf16>, vector<48x128xf32> -> vector<48x128xf32>
    %39 = arith.addf %33, %38 : vector<48x128xf32>
    %40 = vector.shape_cast %39 : vector<48x128xf32> to vector<2x24x128xf32>
    %c0_17 = arith.constant 0 : index
    %c0_18 = arith.constant 0 : index
    %41 = vector.load %arg6[%c0_17, %c0_18] : memref<1x128xf32, #tpu.memory_space<vmem>>, vector<1x128xf32>
    %42 = vector.shape_cast %41 : vector<1x128xf32> to vector<1x1x128xf32>
    %43 = vector.broadcast %42 : vector<1x1x128xf32> to vector<2x24x128xf32>
    %44 = arith.mulf %40, %43 : vector<2x24x128xf32>
    %c0_19 = arith.constant 0 : index
    %c0_20 = arith.constant 0 : index
    %45 = vector.load %arg7[%c0_19, %c0_20] : memref<1x128xf32, #tpu.memory_space<vmem>>, vector<1x128xf32>
    %46 = vector.shape_cast %45 : vector<1x128xf32> to vector<1x1x128xf32>
    %47 = vector.broadcast %46 : vector<1x1x128xf32> to vector<2x24x128xf32>
    %48 = arith.addf %44, %47 : vector<2x24x128xf32>
    %cst_21 = arith.constant 0.000000e+00 : f32
    %49 = vector.broadcast %cst_21 : f32 to vector<2x24x128xf32>
    %50 = arith.maximumf %48, %49 : vector<2x24x128xf32>
    %cst_22 = arith.constant 0.000000e+00 : bf16
    %51 = vector.broadcast %cst_22 : bf16 to vector<2x1x128xbf16>
    %c0_23 = arith.constant 0 : index
    %c0_24 = arith.constant 0 : index
    %c0_25 = arith.constant 0 : index
    %52 = vector.load %arg9[%c0_23, %c0_24, %c0_25] : memref<2x26x128xbf16, #tpu.memory_space<vmem>>, vector<2x1x128xbf16>
    tpu.vector_store %arg9[%c0_23, %c0_24, %c0_25], %51 {strides = array<i32>} : memref<2x26x128xbf16, #tpu.memory_space<vmem>>, vector<2x1x128xbf16>,
    %c0_26 = arith.constant 0 : index
    %c25 = arith.constant 25 : index
    %c0_27 = arith.constant 0 : index
    %53 = vector.load %arg9[%c0_26, %c25, %c0_27] : memref<2x26x128xbf16, #tpu.memory_space<vmem>>, vector<2x1x128xbf16>
    tpu.vector_store %arg9[%c0_26, %c25, %c0_27], %51 {strides = array<i32>} : memref<2x26x128xbf16, #tpu.memory_space<vmem>>, vector<2x1x128xbf16>,
    %54 = arith.truncf %50 : vector<2x24x128xf32> to vector<2x24x128xbf16>
    %c0_28 = arith.constant 0 : index
    %c1_29 = arith.constant 1 : index
    %c0_30 = arith.constant 0 : index
    %55 = vector.load %arg9[%c0_28, %c1_29, %c0_30] : memref<2x26x128xbf16, #tpu.memory_space<vmem>>, vector<2x24x128xbf16>
    tpu.vector_store %arg9[%c0_28, %c1_29, %c0_30], %54 {strides = array<i32>} : memref<2x26x128xbf16, #tpu.memory_space<vmem>>, vector<2x24x128xbf16>,
    %c0_31 = arith.constant 0 : index
    %c0_32 = arith.constant 0 : index
    %c0_33 = arith.constant 0 : index
    %56 = vector.load %arg9[%c0_31, %c0_32, %c0_33] : memref<2x26x128xbf16, #tpu.memory_space<vmem>>, vector<2x24x128xbf16>
    %57 = vector.shape_cast %56 : vector<2x24x128xbf16> to vector<48x128xbf16>
    %c0_34 = arith.constant 0 : index
    %c0_35 = arith.constant 0 : index
    %c0_36 = arith.constant 0 : index
    %58 = vector.load %arg3[%c0_34, %c0_35, %c0_36] : memref<3x128x128xbf16, #tpu.memory_space<vmem>>, vector<1x128x128xbf16>
    %59 = vector.shape_cast %58 : vector<1x128x128xbf16> to vector<128x128xbf16>
    %cst_37 = arith.constant dense<0.000000e+00> : vector<48x128xf32>
    %60 = tpu.matmul %57, %59, %cst_37 {dimension_numbers = #tpu.dot_dimension_numbers<[1], [0], [0], [1], [0, 0, 1, 1], [], []>} : vector<48x128xbf16>, vector<128x128xbf16>, vector<48x128xf32> -> vector<48x128xf32>
    %c0_38 = arith.constant 0 : index
    %c1_39 = arith.constant 1 : index
    %c0_40 = arith.constant 0 : index
    %61 = vector.load %arg9[%c0_38, %c1_39, %c0_40] : memref<2x26x128xbf16, #tpu.memory_space<vmem>>, vector<2x24x128xbf16>
    %62 = vector.shape_cast %61 : vector<2x24x128xbf16> to vector<48x128xbf16>
    %c1_41 = arith.constant 1 : index
    %c0_42 = arith.constant 0 : index
    %c0_43 = arith.constant 0 : index
    %63 = vector.load %arg3[%c1_41, %c0_42, %c0_43] : memref<3x128x128xbf16, #tpu.memory_space<vmem>>, vector<1x128x128xbf16>
    %64 = vector.shape_cast %63 : vector<1x128x128xbf16> to vector<128x128xbf16>
    %cst_44 = arith.constant dense<0.000000e+00> : vector<48x128xf32>
    %65 = tpu.matmul %62, %64, %cst_44 {dimension_numbers = #tpu.dot_dimension_numbers<[1], [0], [0], [1], [0, 0, 1, 1], [], []>} : vector<48x128xbf16>, vector<128x128xbf16>, vector<48x128xf32> -> vector<48x128xf32>
    %66 = arith.addf %60, %65 : vector<48x128xf32>
    %c0_45 = arith.constant 0 : index
    %c2_46 = arith.constant 2 : index
    %c0_47 = arith.constant 0 : index
    %67 = vector.load %arg9[%c0_45, %c2_46, %c0_47] : memref<2x26x128xbf16, #tpu.memory_space<vmem>>, vector<2x24x128xbf16>
    %68 = vector.shape_cast %67 : vector<2x24x128xbf16> to vector<48x128xbf16>
    %c2_48 = arith.constant 2 : index
    %c0_49 = arith.constant 0 : index
    %c0_50 = arith.constant 0 : index
    %69 = vector.load %arg3[%c2_48, %c0_49, %c0_50] : memref<3x128x128xbf16, #tpu.memory_space<vmem>>, vector<1x128x128xbf16>
    %70 = vector.shape_cast %69 : vector<1x128x128xbf16> to vector<128x128xbf16>
    %cst_51 = arith.constant dense<0.000000e+00> : vector<48x128xf32>
    %71 = tpu.matmul %68, %70, %cst_51 {dimension_numbers = #tpu.dot_dimension_numbers<[1], [0], [0], [1], [0, 0, 1, 1], [], []>} : vector<48x128xbf16>, vector<128x128xbf16>, vector<48x128xf32> -> vector<48x128xf32>
    %72 = arith.addf %66, %71 : vector<48x128xf32>
    %73 = vector.shape_cast %72 : vector<48x128xf32> to vector<2x24x128xf32>
    %74 = vector.extract_strided_slice %1 {offsets = [0, 1, 0], sizes = [2, 24, 128], strides = [1, 1, 1]} : vector<2x26x128xf32> to vector<2x24x128xf32>
    %75 = arith.addf %73, %74 : vector<2x24x128xf32>
    %76 = arith.truncf %75 : vector<2x24x128xf32> to vector<2x24x128xbf16>
    %c0_52 = arith.constant 0 : index
    %c0_53 = arith.constant 0 : index
    %c0_54 = arith.constant 0 : index
    %77 = vector.load %arg8[%c0_52, %c0_53, %c0_54] : memref<2x24x128xbf16, #tpu.memory_space<vmem>>, vector<2x24x128xbf16>
    tpu.vector_store %arg8[%c0_52, %c0_53, %c0_54], %76 {strides = array<i32>} : memref<2x24x128xbf16, #tpu.memory_space<vmem>>, vector<2x24x128xbf16>,
    return
  }
  func.func @transform_0(%arg0: i32) -> (i32, i32, i32) {
    %c0_i32 = arith.constant 0 : i32
    %c0_i32_0 = arith.constant 0 : i32
    %c0_i32_1 = arith.constant 0 : i32
    return %arg0, %c0_i32, %c0_i32_0 : i32, i32, i32
  }
  func.func @transform_1(%arg0: i32) -> (i32, i32, i32) {
    %c0_i32 = arith.constant 0 : i32
    %c0_i32_0 = arith.constant 0 : i32
    %c0_i32_1 = arith.constant 0 : i32
    %c0_i32_2 = arith.constant 0 : i32
    return %c0_i32, %c0_i32_0, %c0_i32_1 : i32, i32, i32
  }
  func.func @transform_2(%arg0: i32) -> (i32, i32, i32) {
    %c0_i32 = arith.constant 0 : i32
    %c0_i32_0 = arith.constant 0 : i32
    %c0_i32_1 = arith.constant 0 : i32
    %c0_i32_2 = arith.constant 0 : i32
    return %c0_i32, %c0_i32_0, %c0_i32_1 : i32, i32, i32
  }
  func.func @transform_3(%arg0: i32) -> (i32, i32) {
    %c0_i32 = arith.constant 0 : i32
    %c0_i32_0 = arith.constant 0 : i32
    %c0_i32_1 = arith.constant 0 : i32
    return %c0_i32, %c0_i32_0 : i32, i32
  }
  func.func @transform_4(%arg0: i32) -> (i32, i32) {
    %c0_i32 = arith.constant 0 : i32
    %c0_i32_0 = arith.constant 0 : i32
    %c0_i32_1 = arith.constant 0 : i32
    return %c0_i32, %c0_i32_0 : i32, i32
  }
  func.func @transform_5(%arg0: i32) -> (i32, i32) {
    %c0_i32 = arith.constant 0 : i32
    %c0_i32_0 = arith.constant 0 : i32
    %c0_i32_1 = arith.constant 0 : i32
    return %c0_i32, %c0_i32_0 : i32, i32
  }
  func.func @transform_6(%arg0: i32) -> (i32, i32) {
    %c0_i32 = arith.constant 0 : i32
    %c0_i32_0 = arith.constant 0 : i32
    %c0_i32_1 = arith.constant 0 : i32
    return %c0_i32, %c0_i32_0 : i32, i32
  }
  func.func @transform_7(%arg0: i32) -> (i32, i32, i32) {
    %c0_i32 = arith.constant 0 : i32
    %c0_i32_0 = arith.constant 0 : i32
    %c0_i32_1 = arith.constant 0 : i32
    return %arg0, %c0_i32, %c0_i32_0 : i32, i32, i32
  }
}

</mosaic_0001>

<llo_original>
// kernel: tpu_custom_call.1
$region0: #{tpu_custom_call.1}
  #allocation0 [shape = 'u32[]', space=smem, size = 0x4, offset = 0x4, fixed_abs, tag = 'smem constant byte address 0x4 - core index']
  #allocation1 [shape = 'u32[72,128]{1,0:T(1,128)}', space=vmem, size = 0x9000, scoped, tag = 'internal scratch']
  #allocation2 [shape = 'bf16[2,26,128]{2,1,0:T(8,128)(2,1)}', space=vmem, size = 0x4000, scoped, tag = 'scratch operand']
  %s0 = inlined_call_operand.vmem [shape: bf16[16,26,128], index: 0, kind: input, shape index: {}]
  %s1 = inlined_call_operand.vmem [shape: bf16[3,128,128], index: 1, kind: input, shape index: {}]
  %s2 = inlined_call_operand.vmem [shape: bf16[3,128,128], index: 2, kind: input, shape index: {}]
  %s3 = inlined_call_operand.vmem [shape: f32[1,128], index: 3, kind: input, shape index: {}]
  %s4 = inlined_call_operand.vmem [shape: f32[1,128], index: 4, kind: input, shape index: {}]
  %s5 = inlined_call_operand.vmem [shape: f32[1,128], index: 5, kind: input, shape index: {}]
  %s6 = inlined_call_operand.vmem [shape: f32[1,128], index: 6, kind: input, shape index: {}]
  %s7 = inlined_call_operand.hbm [shape: bf16[16,24,128], index: 7, kind: output, shape index: {}]
  %s8 = sld [smem:[#allocation0]]
  $region61: #{tpu_custom_call.1} parent=0
    _
  %s10 = ssub.s32 1, %s8
  %s11 = scalar_select 0, %s10, %s8
  $region1: #{tpu_custom_call.1} parent=0
    #allocation3 [shape = 'u8[24576]{0}', space=vmem, size = 0x6000, scoped, tag = 'output window, operand 0']
    #allocation4 [shape = 's32[2]{0}', space=sflag, size = 0x8, scoped, tag = 'scoped memory for tpu_custom_call.1']
    %12 = vsyncpa [#allocation4], 0
    %s13 = scalar_lea.sflag [#allocation4], 1
    %14 = vsyncpa %s13, 0
    loop: start=0, step=1, limit=10
    $region2: #{tpu_custom_call.1} parent=1 // loop_pre_header
      _
    $region3: #{tpu_custom_call.1} parent=1 // loop_header
      %s16 = sphi 0, %s20
      %p17 = scmp.ge.s32.totalorder %s16, 10
      %s26 = sphi 0, %s28
      %s29 = sphi 0, %s26
      %s30 = sphi 0, %s29
      %s46 = sphi 0, %s30
      %s50 = sphi 0, %s50
      %s52 = sphi 0, %s50
      %s53 = sphi 0, %s52
      %s67 = sphi 0, %s53
      %s71 = sphi 0, %s71
      %s73 = sphi 0, %s71
      %s74 = sphi 0, %s73
      %s88 = sphi 0, %s74
      %s92 = sphi 0, %s92
      %s94 = sphi 0, %s92
      %s95 = sphi 0, %s94
      %s109 = sphi 0, %s95
      %s113 = sphi 0, %s113
      %s115 = sphi 0, %s113
      %s116 = sphi 0, %s115
      %s130 = sphi 0, %s116
      %s134 = sphi 0, %s134
      %s136 = sphi 0, %s134
      %s137 = sphi 0, %s136
      %s151 = sphi 0, %s137
      %s155 = sphi 0, %s155
      %s157 = sphi 0, %s155
      %s158 = sphi 0, %s157
      %s172 = sphi 0, %s158
      %s178 = sphi 0, %s180
      %s181 = sphi 0, %s178
      %s182 = sphi 0, %s181
      %s198 = sphi 0, %s182
    $region4: #{tpu_custom_call.1} parent=1 // loop_header_branch
      %19 = sbr.rel (%p17) target = $region8
    $region5: #{tpu_custom_call.1} parent=1 // loop_body
      %s21 = ssub.s32 %s16, 1
      %s22 = ssub.s32 %s16, 2
      %s23 = sadd.s32 %s16, 1
      %s24 = ssub.s32 %s16, %s23
      %p25 = scmp.eq.s32.totalorder %s24, 0
      %s27 = sadd.s32 %s26, 1
      %s28 = scalar_select %p25, %s26, %s27
      %p31 = pneg %p25
      %p32 = scmp.eq.s32.totalorder %s16, 7
      %p33 = por %p31, %p32
      %p34 = scmp.ne.s32.totalorder %s26, %s29
      %p35 = scmp.eq.s32.totalorder %s16, 0
      %p36 = por %p34, %p35
      %p37 = scmp.ne.s32.totalorder %s26, %s29
      %p38 = scmp.eq.s32.totalorder %s21, 7
      %p39 = por %p37, %p38
      %p40 = scmp.ne.s32.totalorder %s29, %s30
      %p41 = scmp.eq.s32.totalorder %s21, 0
      %p42 = por %p40, %p41
      %p43 = scmp.ne.s32.totalorder %s29, %s30
      %p44 = scmp.eq.s32.totalorder %s22, 7
      %p45 = por %p43, %p44
      %p47 = scmp.ne.s32.totalorder %s30, %s46
      %p48 = scmp.eq.s32.totalorder %s22, 0
      %p49 = por %p47, %p48
      %s51 = sadd.s32 %s50, 1
      %p54 = scmp.eq.s32.totalorder %s16, 7
      %p55 = scmp.ne.s32.totalorder %s50, %s52
      %p56 = scmp.eq.s32.totalorder %s16, 0
      %p57 = por %p55, %p56
      %p58 = scmp.ne.s32.totalorder %s50, %s52
      %p59 = scmp.eq.s32.totalorder %s21, 7
      %p60 = por %p58, %p59
      %p61 = scmp.ne.s32.totalorder %s52, %s53
      %p62 = scmp.eq.s32.totalorder %s21, 0
      %p63 = por %p61, %p62
      %p64 = scmp.ne.s32.totalorder %s52, %s53
      %p65 = scmp.eq.s32.totalorder %s22, 7
      %p66 = por %p64, %p65
      %p68 = scmp.ne.s32.totalorder %s53, %s67
      %p69 = scmp.eq.s32.totalorder %s22, 0
      %p70 = por %p68, %p69
      %s72 = sadd.s32 %s71, 1
      %p75 = scmp.eq.s32.totalorder %s16, 7
      %p76 = scmp.ne.s32.totalorder %s71, %s73
      %p77 = scmp.eq.s32.totalorder %s16, 0
      %p78 = por %p76, %p77
      %p79 = scmp.ne.s32.totalorder %s71, %s73
      %p80 = scmp.eq.s32.totalorder %s21, 7
      %p81 = por %p79, %p80
      %p82 = scmp.ne.s32.totalorder %s73, %s74
      %p83 = scmp.eq.s32.totalorder %s21, 0
      %p84 = por %p82, %p83
      %p85 = scmp.ne.s32.totalorder %s73, %s74
      %p86 = scmp.eq.s32.totalorder %s22, 7
      %p87 = por %p85, %p86
      %p89 = scmp.ne.s32.totalorder %s74, %s88
      %p90 = scmp.eq.s32.totalorder %s22, 0
      %p91 = por %p89, %p90
      %s93 = sadd.s32 %s92, 1
      %p96 = scmp.eq.s32.totalorder %s16, 7
      %p97 = scmp.ne.s32.totalorder %s92, %s94
      %p98 = scmp.eq.s32.totalorder %s16, 0
      %p99 = por %p97, %p98
      %p100 = scmp.ne.s32.totalorder %s92, %s94
      %p101 = scmp.eq.s32.totalorder %s21, 7
      %p102 = por %p100, %p101
      %p103 = scmp.ne.s32.totalorder %s94, %s95
      %p104 = scmp.eq.s32.totalorder %s21, 0
      %p105 = por %p103, %p104
      %p106 = scmp.ne.s32.totalorder %s94, %s95
      %p107 = scmp.eq.s32.totalorder %s22, 7
      %p108 = por %p106, %p107
      %p110 = scmp.ne.s32.totalorder %s95, %s109
      %p111 = scmp.eq.s32.totalorder %s22, 0
      %p112 = por %p110, %p111
      %s114 = sadd.s32 %s113, 1
      %p117 = scmp.eq.s32.totalorder %s16, 7
      %p118 = scmp.ne.s32.totalorder %s113, %s115
      %p119 = scmp.eq.s32.totalorder %s16, 0
      %p120 = por %p118, %p119
      %p121 = scmp.ne.s32.totalorder %s113, %s115
      %p122 = scmp.eq.s32.totalorder %s21, 7
      %p123 = por %p121, %p122
      %p124 = scmp.ne.s32.totalorder %s115, %s116
      %p125 = scmp.eq.s32.totalorder %s21, 0
      %p126 = por %p124, %p125
      %p127 = scmp.ne.s32.totalorder %s115, %s116
      %p128 = scmp.eq.s32.totalorder %s22, 7
      %p129 = por %p127, %p128
      %p131 = scmp.ne.s32.totalorder %s116, %s130
      %p132 = scmp.eq.s32.totalorder %s22, 0
      %p133 = por %p131, %p132
      %s135 = sadd.s32 %s134, 1
      %p138 = scmp.eq.s32.totalorder %s16, 7
      %p139 = scmp.ne.s32.totalorder %s134, %s136
      %p140 = scmp.eq.s32.totalorder %s16, 0
      %p141 = por %p139, %p140
      %p142 = scmp.ne.s32.totalorder %s134, %s136
      %p143 = scmp.eq.s32.totalorder %s21, 7
      %p144 = por %p142, %p143
      %p145 = scmp.ne.s32.totalorder %s136, %s137
      %p146 = scmp.eq.s32.totalorder %s21, 0
      %p147 = por %p145, %p146
      %p148 = scmp.ne.s32.totalorder %s136, %s137
      %p149 = scmp.eq.s32.totalorder %s22, 7
      %p150 = por %p148, %p149
      %p152 = scmp.ne.s32.totalorder %s137, %s151
      %p153 = scmp.eq.s32.totalorder %s22, 0
      %p154 = por %p152, %p153
      %s156 = sadd.s32 %s155, 1
      %p159 = scmp.eq.s32.totalorder %s16, 7
      %p160 = scmp.ne.s32.totalorder %s155, %s157
      %p161 = scmp.eq.s32.totalorder %s16, 0
      %p162 = por %p160, %p161
      %p163 = scmp.ne.s32.totalorder %s155, %s157
      %p164 = scmp.eq.s32.totalorder %s21, 7
      %p165 = por %p163, %p164
      %p166 = scmp.ne.s32.totalorder %s157, %s158
      %p167 = scmp.eq.s32.totalorder %s21, 0
      %p168 = por %p166, %p167
      %p169 = scmp.ne.s32.totalorder %s157, %s158
      %p170 = scmp.eq.s32.totalorder %s22, 7
      %p171 = por %p169, %p170
      %p173 = scmp.ne.s32.totalorder %s158, %s172
      %p174 = scmp.eq.s32.totalorder %s22, 0
      %p175 = por %p173, %p174
      %s176 = ssub.s32 %s16, %s23
      %p177 = scmp.eq.s32.totalorder %s176, 0
      %s179 = sadd.s32 %s178, 1
      %s180 = scalar_select %p177, %s178, %s179
      %p183 = pneg %p177
      %p184 = scmp.eq.s32.totalorder %s16, 7
      %p185 = por %p183, %p184
      %p186 = scmp.ne.s32.totalorder %s178, %s181
      %p187 = scmp.eq.s32.totalorder %s16, 0
      %p188 = por %p186, %p187
      %p189 = scmp.ne.s32.totalorder %s178, %s181
      %p190 = scmp.eq.s32.totalorder %s21, 7
      %p191 = por %p189, %p190
      %p192 = scmp.ne.s32.totalorder %s181, %s182
      %p193 = scmp.eq.s32.totalorder %s21, 0
      %p194 = por %p192, %p193
      %p195 = scmp.ne.s32.totalorder %s181, %s182
      %p196 = scmp.eq.s32.totalorder %s22, 7
      %p197 = por %p195, %p196
      %p199 = scmp.ne.s32.totalorder %s182, %s198
      %p200 = scmp.eq.s32.totalorder %s22, 0
      %p201 = por %p199, %p200
      %p202 = scmp.le.s32.totalorder 1, %s16
      %p203 = scmp.lt.s32.totalorder %s16, 9
      %p204 = pnand %p202, %p203
      %p205 = pneg %p204
      // Predicated region
      $region9: #{tpu_custom_call.1} parent=5 // pred_check
        _
      $region10: #{tpu_custom_call.1} parent=5 // pred_check_branch
        %207 = sbr.rel (%p204) target = $region12
      $region11: #{tpu_custom_call.1} parent=5 // pred_region
        %s208 = ssub.s32 %s16, 1
        // Predicated region
        $region13: #{tpu_custom_call.1} parent=11 // pred_check
          %p209 = pneg %p63
        $region14: #{tpu_custom_call.1} parent=11 // pred_check_branch
          %211 = sbr.rel (%p209) target = $region16
        $region15: #{tpu_custom_call.1} parent=11 // pred_region
          _
        $region16: #{tpu_custom_call.1} parent=11 // pred_fallthru
          _
        // Predicated region
        $region17: #{tpu_custom_call.1} parent=11 // pred_check
          %p212 = pneg %p84
        $region18: #{tpu_custom_call.1} parent=11 // pred_check_branch
          %214 = sbr.rel (%p212) target = $region20
        $region19: #{tpu_custom_call.1} parent=11 // pred_region
          _
        $region20: #{tpu_custom_call.1} parent=11 // pred_fallthru
          _
        // Predicated region
        $region21: #{tpu_custom_call.1} parent=11 // pred_check
          %p215 = pneg %p105
        $region22: #{tpu_custom_call.1} parent=11 // pred_check_branch
          %217 = sbr.rel (%p215) target = $region24
        $region23: #{tpu_custom_call.1} parent=11 // pred_region
          _
        $region24: #{tpu_custom_call.1} parent=11 // pred_fallthru
          _
        // Predicated region
        $region25: #{tpu_custom_call.1} parent=11 // pred_check
          %p218 = pneg %p126
        $region26: #{tpu_custom_call.1} parent=11 // pred_check_branch
          %220 = sbr.rel (%p218) target = $region28
        $region27: #{tpu_custom_call.1} parent=11 // pred_region
          _
        $region28: #{tpu_custom_call.1} parent=11 // pred_fallthru
          _
        // Predicated region
        $region29: #{tpu_custom_call.1} parent=11 // pred_check
          %p221 = pneg %p147
        $region30: #{tpu_custom_call.1} parent=11 // pred_check_branch
          %223 = sbr.rel (%p221) target = $region32
        $region31: #{tpu_custom_call.1} parent=11 // pred_region
          _
        $region32: #{tpu_custom_call.1} parent=11 // pred_fallthru
          _
        // Predicated region
        $region33: #{tpu_custom_call.1} parent=11 // pred_check
          %p224 = pneg %p168
        $region34: #{tpu_custom_call.1} parent=11 // pred_check_branch
          %226 = sbr.rel (%p224) target = $region36
        $region35: #{tpu_custom_call.1} parent=11 // pred_region
          _
        $region36: #{tpu_custom_call.1} parent=11 // pred_fallthru
          _
      $region12: #{tpu_custom_call.1} parent=5 // pred_fallthru
        _
      %p227 = scmp.lt.s32.totalorder %s16, 8
      // Predicated region
      $region37: #{tpu_custom_call.1} parent=5 // pred_check
        %p228 = pneg %p227
      $region38: #{tpu_custom_call.1} parent=5 // pred_check_branch
        %230 = sbr.rel (%p228) target = $region40
      $region39: #{tpu_custom_call.1} parent=5 // pred_region
        // Predicated region
        $region41: #{tpu_custom_call.1} parent=39 // pred_check
          %p231 = pneg %p36
        $region42: #{tpu_custom_call.1} parent=39 // pred_check_branch
          %233 = sbr.rel (%p231) target = $region44
        $region43: #{tpu_custom_call.1} parent=39 // pred_region
          %s234 = smul.u32 2, %s16
          %p235 = scmp.lt.s32.totalorder %s234, 15
          %s236 = scalar_select %p235, %s234, 15
          %s237 = smul.addr %s236, 4
          %s238 = smul.addr %s237, 4
          %s239 = scalar_lea.vmem %s0, %s238
          %s240 = smul.u32 2, %s16
        $region44: #{tpu_custom_call.1} parent=39 // pred_fallthru
          _
      $region40: #{tpu_custom_call.1} parent=5 // pred_fallthru
        _
      %p241 = scmp.le.s32.totalorder 1, %s16
      %p242 = scmp.lt.s32.totalorder %s16, 9
      %p243 = pnand %p241, %p242
      %p244 = pneg %p243
      // Predicated region
      $region45: #{tpu_custom_call.1} parent=5 // pred_check
        _
      $region46: #{tpu_custom_call.1} parent=5 // pred_check_branch
        %246 = sbr.rel (%p243) target = $region48
      $region47: #{tpu_custom_call.1} parent=5 // pred_region
        %s247 = ssub.s32 %s16, 1
        %s248 = smul.u32 2, %s21
        %p249 = scmp.lt.s32.totalorder %s248, 15
        %s250 = scalar_select %p249, %s248, 15
        %s251 = smul.addr %s250, 4
        %s252 = smul.addr %s251, 4
        %s253 = scalar_lea.vmem %s0, %s252
        %p254 = pneg %p42
        %p255 = pneg %p39
        %p256 = pneg %p63
        %p257 = pneg %p60
        %p258 = pneg %p84
        %p259 = pneg %p81
        %p260 = pneg %p105
        %p261 = pneg %p102
        %p262 = pneg %p126
        %p263 = pneg %p123
        %p264 = pneg %p147
        %p265 = pneg %p144
        %p266 = pneg %p168
        %p267 = pneg %p165
        %p268 = pneg %p194
        %p269 = pneg %p191
        %s270 = sand.u32 %s181, 1
        %s271 = scalar_lea.sflag [#allocation4], %s270
        %s272 = sand.u32 %s181, 1
        %s273 = smul.addr %s272, 24
        %s274 = scalar_lea.vmem [#allocation3], %s273
        %s275 = smul.u32 2, %s21
        %p276 = scmp.lt.s32.totalorder %s275, 15
        %s277 = scalar_select %p276, %s275, 15
        %s278 = smul.addr %s277, 4
        %s279 = smul.addr %s278, 4
        %s280 = scalar_lea.vmem %s0, %s279
        %s281 = smul.u32 2, %s21
        %s282 = smul.u32 2, %s21
        %v284 = vld [vmem:[%s280] sm:$0xf]
        %v285 = vld [vmem:[%s280 + $0x4] sm:$0xf]
        %v286 = vld [vmem:[%s280 + $0x8] sm:$0xf]
        %v287 = vld [vmem:[%s280 + $0xc] sm:$0x1]
        %v288 = vld [vmem:[%s280 + $0x10] sm:$0xf]
        %v289 = vld [vmem:[%s280 + $0x14] sm:$0xf]
        %v290 = vld [vmem:[%s280 + $0x18] sm:$0xf]
        %v291 = vld [vmem:[%s280 + $0x1c] sm:$0x1]
        %v292 = vunpack.c.l.bf16 %v284
        %v293 = vunpack.c.l.bf16 %v285
        %v294 = vunpack.c.l.bf16 %v286
        %v295 = vunpack.c.l.bf16 %v287
        %v296 = vunpack.c.l.bf16 %v288
        %v297 = vunpack.c.l.bf16 %v289
        %v298 = vunpack.c.l.bf16 %v290
        %v299 = vunpack.c.l.bf16 %v291
        %v300 = vld [vmem:[%s3] sm:$0x1]
        %v302 = vperm.slane %v300, 0
        %v304 = vmul.f32 %v292, %v302
        %v305 = vmul.f32 %v293, %v302
        %v306 = vmul.f32 %v294, %v302
        %v307 = vmul.f32 %v295, %v302
        %v308 = vmul.f32 %v296, %v302
        %v309 = vmul.f32 %v297, %v302
        %v310 = vmul.f32 %v298, %v302
        %v311 = vmul.f32 %v299, %v302
        %v312 = vld [vmem:[%s4] sm:$0x1]
        %v314 = vperm.slane %v312, 0
        %v316 = vadd.f32 %v304, %v314
        %v317 = vadd.f32 %v305, %v314
        %v318 = vadd.f32 %v306, %v314
        %v319 = vadd.f32 %v307, %v314
        %v320 = vadd.f32 %v308, %v314
        %v321 = vadd.f32 %v309, %v314
        %v322 = vadd.f32 %v310, %v314
        %v323 = vadd.f32 %v311, %v314
        %v324 = vmax.f32 %v316, 0.0
        %v325 = vmax.f32 %v317, 0.0
        %v326 = vmax.f32 %v318, 0.0
        %v327 = vmax.f32 %v319, 0.0
        %v328 = vmax.f32 %v320, 0.0
        %v329 = vmax.f32 %v321, 0.0
        %v330 = vmax.f32 %v322, 0.0
        %v331 = vmax.f32 %v323, 0.0
        %v332 = vlaneseq
        %v333 = vshrl.u32 %v332, 7
        %v334 = vadd.s32 %v333, 8
        %v335 = vadd.s32 %v333, 16
        %v336 = vadd.s32 %v333, 24
        %vm337 = vcmp.ge.s32.totalorder %v333, 1
        %vm338 = vcmp.ge.s32.totalorder %v334, 1
        %vm339 = vcmp.ge.s32.totalorder %v335, 1
        %vm340 = vcmp.ge.s32.totalorder %v336, 1
        %vm341 = vcmp.lt.s32.totalorder %v333, 25
        %vm342 = vcmp.lt.s32.totalorder %v334, 25
        %vm343 = vcmp.lt.s32.totalorder %v335, 25
        %vm344 = vcmp.lt.s32.totalorder %v336, 25
        %vm345 = vmand %vm337, %vm341
        %vm346 = vmand %vm338, %vm342
        %vm347 = vmand %vm339, %vm343
        %vm348 = vmand %vm340, %vm344
        %v349 = vsel %vm345, 1, 0
        %v350 = vsel %vm346, 1, 0
        %v351 = vsel %vm347, 1, 0
        %v352 = vsel %vm348, 1, 0
        %vm353 = vcmp.eq.s32.totalorder %v349, 1
        %vm354 = vcmp.eq.s32.totalorder %v350, 1
        %vm355 = vcmp.eq.s32.totalorder %v351, 1
        %vm356 = vcmp.eq.s32.totalorder %v352, 1
        %v357 = vsel %vm353, %v324, 0.0
        %v358 = vsel %vm354, %v325, 0.0
        %v359 = vsel %vm355, %v326, 0.0
        %v360 = vsel %vm356, %v327, 0.0
        %v361 = vsel %vm353, %v328, 0.0
        %v362 = vsel %vm354, %v329, 0.0
        %v363 = vsel %vm355, %v330, 0.0
        %v364 = vsel %vm356, %v331, 0.0
        %v365 = vpack.c.bf16 %v357, %v357
        %v366 = vpack.c.bf16 %v358, %v358
        %v367 = vpack.c.bf16 %v359, %v359
        %v368 = vpack.c.bf16 %v360, %v360
        %v369 = vpack.c.bf16 %v361, %v361
        %v370 = vpack.c.bf16 %v362, %v362
        %v371 = vpack.c.bf16 %v363, %v363
        %v372 = vpack.c.bf16 %v364, %v364
        %v373 = vld [vmem:[%s1] sm:$0xf]
        %v374 = vld [vmem:[%s1 + $0x4] sm:$0xf]
        %v375 = vld [vmem:[%s1 + $0x8] sm:$0xf]
        %v376 = vld [vmem:[%s1 + $0xc] sm:$0xf]
        %v377 = vld [vmem:[%s1 + $0x10] sm:$0xf]
        %v378 = vld [vmem:[%s1 + $0x14] sm:$0xf]
        %v379 = vld [vmem:[%s1 + $0x18] sm:$0xf]
        %v380 = vld [vmem:[%s1 + $0x1c] sm:$0xf]
        %v381 = vld [vmem:[%s1 + $0x20] sm:$0xf]
        %v382 = vld [vmem:[%s1 + $0x24] sm:$0xf]
        %v383 = vld [vmem:[%s1 + $0x28] sm:$0xf]
        %v384 = vld [vmem:[%s1 + $0x2c] sm:$0xf]
        %v385 = vld [vmem:[%s1 + $0x30] sm:$0xf]
        %v386 = vld [vmem:[%s1 + $0x34] sm:$0xf]
        %v387 = vld [vmem:[%s1 + $0x38] sm:$0xf]
        %v388 = vld [vmem:[%s1 + $0x3c] sm:$0xf]
        %vm389 = vsmask.f32 3328
        %vm390 = vsmask.f32 7440
        %vm391 = vmor %vm389, %vm390
        %v393 = vshrl.u32 %v365, 16
        %v395 = vrot.slane %v393, 4
        %v396 = vshll.u32 %v365, 16
        %v398 = vrot.slane %v396, 5
        %v399 = vor.u32 %v395, %v398
        %v400 = vrot.slane %v399, 4
        %v402 = vshll.u32 %v366, 16
        %v404 = vrot.slane %v402, 5
        %v405 = vsel %vm391, %v400, %v404
        %v406 = vshrl.u32 %v366, 16
        %v408 = vrot.slane %v406, 4
        %v409 = vor.u32 %v408, %v404
        %v410 = vrot.slane %v409, 4
        %v412 = vshll.u32 %v367, 16
        %v414 = vrot.slane %v412, 5
        %v415 = vsel %vm391, %v410, %v414
        %v416 = vshrl.u32 %v367, 16
        %v418 = vrot.slane %v416, 4
        %v419 = vor.u32 %v418, %v414
        %v420 = vrot.slane %v419, 4
        %v422 = vshll.u32 %v368, 16
        %v424 = vrot.slane %v422, 5
        %v425 = vsel %vm391, %v420, %v424
        %v427 = vshrl.u32 %v369, 16
        %v429 = vrot.slane %v427, 4
        %v430 = vshll.u32 %v369, 16
        %v432 = vrot.slane %v430, 5
        %v433 = vor.u32 %v429, %v432
        %v434 = vrot.slane %v433, 4
        %v436 = vshll.u32 %v370, 16
        %v438 = vrot.slane %v436, 5
        %v439 = vsel %vm391, %v434, %v438
        %v440 = vshrl.u32 %v370, 16
        %v442 = vrot.slane %v440, 4
        %v443 = vor.u32 %v442, %v438
        %v444 = vrot.slane %v443, 4
        %v446 = vshll.u32 %v371, 16
        %v448 = vrot.slane %v446, 5
        %v449 = vsel %vm391, %v444, %v448
        %v450 = vshrl.u32 %v371, 16
        %v452 = vrot.slane %v450, 4
        %v453 = vor.u32 %v452, %v448
        %v454 = vrot.slane %v453, 4
        %v456 = vshll.u32 %v372, 16
        %v458 = vrot.slane %v456, 5
        %v459 = vsel %vm391, %v454, %v458
        %s460 = scalar_lea.vmem %s1, 64
        %v461 = vld [vmem:[%s460] sm:$0xf]
        %v462 = vld [vmem:[%s460 + $0x4] sm:$0xf]
        %v463 = vld [vmem:[%s460 + $0x8] sm:$0xf]
        %v464 = vld [vmem:[%s460 + $0xc] sm:$0xf]
        %v465 = vld [vmem:[%s460 + $0x10] sm:$0xf]
        %v466 = vld [vmem:[%s460 + $0x14] sm:$0xf]
        %v467 = vld [vmem:[%s460 + $0x18] sm:$0xf]
        %v468 = vld [vmem:[%s460 + $0x1c] sm:$0xf]
        %v469 = vld [vmem:[%s460 + $0x20] sm:$0xf]
        %v470 = vld [vmem:[%s460 + $0x24] sm:$0xf]
        %v471 = vld [vmem:[%s460 + $0x28] sm:$0xf]
        %v472 = vld [vmem:[%s460 + $0x2c] sm:$0xf]
        %v473 = vld [vmem:[%s460 + $0x30] sm:$0xf]
        %v474 = vld [vmem:[%s460 + $0x34] sm:$0xf]
        %v475 = vld [vmem:[%s460 + $0x38] sm:$0xf]
        %v476 = vld [vmem:[%s460 + $0x3c] sm:$0xf]
        %v477 = vunpack.c.l.b16 %v405
        %v478 = vunpack.c.l.b16 %v415
        %v479 = vunpack.c.l.b16 %v425
        %v480 = vunpack.c.l.b16 %v439
        %v481 = vunpack.c.l.b16 %v449
        %v482 = vunpack.c.l.b16 %v459
        %v483 = vpack.c.b16 %v478, %v477
        %v484 = vpack.c.b16 %v480, %v479
        %v485 = vpack.c.b16 %v482, %v481
        %v505 = vunpack.c.l.b16 %v461
        %v506 = vunpack.c.l.b16 %v462
        %v507 = vunpack.c.l.b16 %v463
        %v508 = vunpack.c.l.b16 %v464
        %v509 = vunpack.c.l.b16 %v465
        %v510 = vunpack.c.l.b16 %v466
        %v511 = vunpack.c.l.b16 %v467
        %v512 = vunpack.c.l.b16 %v468
        %v513 = vunpack.c.l.b16 %v469
        %v514 = vunpack.c.l.b16 %v470
        %v515 = vunpack.c.l.b16 %v471
        %v516 = vunpack.c.l.b16 %v472
        %v517 = vunpack.c.l.b16 %v473
        %v518 = vunpack.c.l.b16 %v474
        %v519 = vunpack.c.l.b16 %v475
        %v520 = vunpack.c.l.b16 %v476
        %v521 = vpack.c.b16 %v506, %v505
        %v522 = vpack.c.b16 %v508, %v507
        %v523 = vpack.c.b16 %v510, %v509
        %v524 = vpack.c.b16 %v512, %v511
        %v525 = vpack.c.b16 %v514, %v513
        %v526 = vpack.c.b16 %v516, %v515
        %v527 = vpack.c.b16 %v518, %v517
        %v528 = vpack.c.b16 %v520, %v519
        %537 = vmatpush.bf16.msra.mxu0 %v528
        %538 = vmatpush.bf16.msra.mxu0 %v527
        %539 = vmatpush.bf16.msra.mxu0 %v526
        %540 = vmatpush.bf16.msra.mxu0 %v525
        %541 = vmatpush.bf16.msra.mxu0 %v524
        %542 = vmatpush.bf16.msra.mxu0 %v523
        %543 = vmatpush.bf16.msra.mxu0 %v522
        %544 = vmatpush.bf16.msra.mxu0 %v521
        %545 = vmatmul.bf16.gmra.mxu0 %v483
        %v546 = vpop.f32.mrf.mxu0
        %v547 = vadd.f32 0.0, %v546
        %v548 = vpop.f32.mrf.mxu0
        %v549 = vadd.f32 0.0, %v548
        %550 = vmatmul.bf16.gmra.mxu0 %v484
        %v551 = vpop.f32.mrf.mxu0
        %v552 = vadd.f32 0.0, %v551
        %v553 = vpop.f32.mrf.mxu0
        %v554 = vadd.f32 0.0, %v553
        %555 = vmatmul.bf16.gmra.mxu0 %v485
        %v556 = vpop.f32.mrf.mxu0
        %v557 = vadd.f32 0.0, %v556
        %v558 = vpop.f32.mrf.mxu0
        %v559 = vadd.f32 0.0, %v558
        %560 = vdwg.mxu0
        %v567 = vunpack.c.l.b16 %v365
        %v568 = vunpack.c.l.b16 %v366
        %v569 = vunpack.c.l.b16 %v367
        %v570 = vunpack.c.l.b16 %v369
        %v571 = vunpack.c.l.b16 %v370
        %v572 = vunpack.c.l.b16 %v371
        %v573 = vpack.c.b16 %v568, %v567
        %v574 = vpack.c.b16 %v570, %v569
        %v575 = vpack.c.b16 %v572, %v571
        %v595 = vunpack.c.l.b16 %v373
        %v596 = vunpack.c.l.b16 %v374
        %v597 = vunpack.c.l.b16 %v375
        %v598 = vunpack.c.l.b16 %v376
        %v599 = vunpack.c.l.b16 %v377
        %v600 = vunpack.c.l.b16 %v378
        %v601 = vunpack.c.l.b16 %v379
        %v602 = vunpack.c.l.b16 %v380
        %v603 = vunpack.c.l.b16 %v381
        %v604 = vunpack.c.l.b16 %v382
        %v605 = vunpack.c.l.b16 %v383
        %v606 = vunpack.c.l.b16 %v384
        %v607 = vunpack.c.l.b16 %v385
        %v608 = vunpack.c.l.b16 %v386
        %v609 = vunpack.c.l.b16 %v387
        %v610 = vunpack.c.l.b16 %v388
        %v611 = vpack.c.b16 %v596, %v595
        %v612 = vpack.c.b16 %v598, %v597
        %v613 = vpack.c.b16 %v600, %v599
        %v614 = vpack.c.b16 %v602, %v601
        %v615 = vpack.c.b16 %v604, %v603
        %v616 = vpack.c.b16 %v606, %v605
        %v617 = vpack.c.b16 %v608, %v607
        %v618 = vpack.c.b16 %v610, %v609
        %627 = vmatpush.bf16.msra.mxu0 %v618
        %628 = vmatpush.bf16.msra.mxu0 %v617
        %629 = vmatpush.bf16.msra.mxu0 %v616
        %630 = vmatpush.bf16.msra.mxu0 %v615
        %631 = vmatpush.bf16.msra.mxu0 %v614
        %632 = vmatpush.bf16.msra.mxu0 %v613
        %633 = vmatpush.bf16.msra.mxu0 %v612
        %634 = vmatpush.bf16.msra.mxu0 %v611
        %635 = vmatmul.bf16.gmra.mxu0 %v573
        %v636 = vpop.f32.mrf.mxu0
        %v637 = vadd.f32 %v547, %v636
        %v638 = vpop.f32.mrf.mxu0
        %v639 = vadd.f32 %v549, %v638
        %640 = vmatmul.bf16.gmra.mxu0 %v574
        %v641 = vpop.f32.mrf.mxu0
        %v642 = vadd.f32 %v552, %v641
        %v643 = vpop.f32.mrf.mxu0
        %v644 = vadd.f32 %v554, %v643
        %645 = vmatmul.bf16.gmra.mxu0 %v575
        %v646 = vpop.f32.mrf.mxu0
        %v647 = vadd.f32 %v557, %v646
        %v648 = vpop.f32.mrf.mxu0
        %v649 = vadd.f32 %v559, %v648
        %650 = vdwg.mxu0
        %vm653 = vcmask 1042432
        %vm654 = vcmask 1046532
        %vm655 = vmor %vm653, %vm654
        %v656 = vrot.slane %v365, 5
        %v657 = vrot.slane %v656, 4
        %v658 = vrot.slane %v366, 5
        %v659 = vsel %vm655, %v657, %v658
        %v660 = vrot.slane %v658, 4
        %v661 = vrot.slane %v367, 5
        %v662 = vsel %vm655, %v660, %v661
        %v663 = vrot.slane %v661, 4
        %v664 = vrot.slane %v368, 5
        %v665 = vsel %vm655, %v663, %v664
        %v666 = vrot.slane %v369, 5
        %v667 = vrot.slane %v666, 4
        %v668 = vrot.slane %v370, 5
        %v669 = vsel %vm655, %v667, %v668
        %v670 = vrot.slane %v668, 4
        %v671 = vrot.slane %v371, 5
        %v672 = vsel %vm655, %v670, %v671
        %v673 = vrot.slane %v671, 4
        %v674 = vrot.slane %v372, 5
        %v675 = vsel %vm655, %v673, %v674
        %s676 = scalar_lea.vmem %s1, 128
        %v677 = vld [vmem:[%s676] sm:$0xf]
        %v678 = vld [vmem:[%s676 + $0x4] sm:$0xf]
        %v679 = vld [vmem:[%s676 + $0x8] sm:$0xf]
        %v680 = vld [vmem:[%s676 + $0xc] sm:$0xf]
        %v681 = vld [vmem:[%s676 + $0x10] sm:$0xf]
        %v682 = vld [vmem:[%s676 + $0x14] sm:$0xf]
        %v683 = vld [vmem:[%s676 + $0x18] sm:$0xf]
        %v684 = vld [vmem:[%s676 + $0x1c] sm:$0xf]
        %v685 = vld [vmem:[%s676 + $0x20] sm:$0xf]
        %v686 = vld [vmem:[%s676 + $0x24] sm:$0xf]
        %v687 = vld [vmem:[%s676 + $0x28] sm:$0xf]
        %v688 = vld [vmem:[%s676 + $0x2c] sm:$0xf]
        %v689 = vld [vmem:[%s676 + $0x30] sm:$0xf]
        %v690 = vld [vmem:[%s676 + $0x34] sm:$0xf]
        %v691 = vld [vmem:[%s676 + $0x38] sm:$0xf]
        %v692 = vld [vmem:[%s676 + $0x3c] sm:$0xf]
        %v693 = vunpack.c.l.b16 %v659
        %v694 = vunpack.c.l.b16 %v662
        %v695 = vunpack.c.l.b16 %v665
        %v696 = vunpack.c.l.b16 %v669
        %v697 = vunpack.c.l.b16 %v672
        %v698 = vunpack.c.l.b16 %v675
        %v699 = vpack.c.b16 %v694, %v693
        %v700 = vpack.c.b16 %v696, %v695
        %v701 = vpack.c.b16 %v698, %v697
        %v721 = vunpack.c.l.b16 %v677
        %v722 = vunpack.c.l.b16 %v678
        %v723 = vunpack.c.l.b16 %v679
        %v724 = vunpack.c.l.b16 %v680
        %v725 = vunpack.c.l.b16 %v681
        %v726 = vunpack.c.l.b16 %v682
        %v727 = vunpack.c.l.b16 %v683
        %v728 = vunpack.c.l.b16 %v684
        %v729 = vunpack.c.l.b16 %v685
        %v730 = vunpack.c.l.b16 %v686
        %v731 = vunpack.c.l.b16 %v687
        %v732 = vunpack.c.l.b16 %v688
        %v733 = vunpack.c.l.b16 %v689
        %v734 = vunpack.c.l.b16 %v690
        %v735 = vunpack.c.l.b16 %v691
        %v736 = vunpack.c.l.b16 %v692
        %v737 = vpack.c.b16 %v722, %v721
        %v738 = vpack.c.b16 %v724, %v723
        %v739 = vpack.c.b16 %v726, %v725
        %v740 = vpack.c.b16 %v728, %v727
        %v741 = vpack.c.b16 %v730, %v729
        %v742 = vpack.c.b16 %v732, %v731
        %v743 = vpack.c.b16 %v734, %v733
        %v744 = vpack.c.b16 %v736, %v735
        %753 = vmatpush.bf16.msra.mxu0 %v744
        %754 = vmatpush.bf16.msra.mxu0 %v743
        %755 = vmatpush.bf16.msra.mxu0 %v742
        %756 = vmatpush.bf16.msra.mxu0 %v741
        %757 = vmatpush.bf16.msra.mxu0 %v740
        %758 = vmatpush.bf16.msra.mxu0 %v739
        %759 = vmatpush.bf16.msra.mxu0 %v738
        %760 = vmatpush.bf16.msra.mxu0 %v737
        %761 = vmatmul.bf16.gmra.mxu0 %v699
        %v762 = vpop.f32.mrf.mxu0
        %v763 = vadd.f32 0.0, %v762
        %v764 = vpop.f32.mrf.mxu0
        %v765 = vadd.f32 0.0, %v764
        %766 = vmatmul.bf16.gmra.mxu0 %v700
        %v767 = vpop.f32.mrf.mxu0
        %v768 = vadd.f32 0.0, %v767
        %v769 = vpop.f32.mrf.mxu0
        %v770 = vadd.f32 0.0, %v769
        %771 = vmatmul.bf16.gmra.mxu0 %v701
        %v772 = vpop.f32.mrf.mxu0
        %v773 = vadd.f32 0.0, %v772
        %v774 = vpop.f32.mrf.mxu0
        %v775 = vadd.f32 0.0, %v774
        %776 = vdwg.mxu0
        %v777 = vadd.f32 %v637, %v763
        %v778 = vadd.f32 %v639, %v765
        %v779 = vadd.f32 %v642, %v768
        %v780 = vadd.f32 %v644, %v770
        %v781 = vadd.f32 %v647, %v773
        %v782 = vadd.f32 %v649, %v775
        %v783 = vld [vmem:[%s5] sm:$0x1]
        %v785 = vperm.slane %v783, 0
        %v787 = vmul.f32 %v777, %v785
        %v788 = vmul.f32 %v778, %v785
        %v789 = vmul.f32 %v779, %v785
        %v790 = vmul.f32 %v780, %v785
        %v791 = vmul.f32 %v781, %v785
        %v792 = vmul.f32 %v782, %v785
        %v793 = vld [vmem:[%s6] sm:$0x1]
        %v795 = vperm.slane %v793, 0
        %v797 = vadd.f32 %v787, %v795
        %v798 = vadd.f32 %v788, %v795
        %v799 = vadd.f32 %v789, %v795
        %v800 = vadd.f32 %v790, %v795
        %v801 = vadd.f32 %v791, %v795
        %v802 = vadd.f32 %v792, %v795
        %v803 = vmax.f32 %v797, 0.0
        %v804 = vmax.f32 %v798, 0.0
        %v805 = vmax.f32 %v799, 0.0
        %v806 = vmax.f32 %v800, 0.0
        %v807 = vmax.f32 %v801, 0.0
        %v808 = vmax.f32 %v802, 0.0
        %vm809 = vcmask 1040384
        %vm810 = vsmask.f32 256
        %vm811 = vmand %vm809, %vm810
        %v812 = vld [vmem:[#allocation2] sm:$0x1]
        %v813 = vsel %vm811, 0, %v812
        %814 = vst [vmem:[#allocation2] sm:$0x1] %v813
        %v815 = vld [vmem:[#allocation2 + $0x10] sm:$0x1]
        %v816 = vsel %vm811, 0, %v815
        %817 = vst [vmem:[#allocation2 + $0x10] sm:$0x1] %v816
        %vm818 = vsmask.f32 7938
        %vm819 = vmand %vm809, %vm818
        %v820 = vld [vmem:[#allocation2 + $0xc] sm:$0x1]
        %v821 = vsel %vm819, 0, %v820
        %822 = vst [vmem:[#allocation2 + $0xc] sm:$0x1] %v821
        %v823 = vld [vmem:[#allocation2 + $0x1c] sm:$0x1]
        %v824 = vsel %vm819, 0, %v823
        %825 = vst [vmem:[#allocation2 + $0x1c] sm:$0x1] %v824
        %v826 = vpack.c.bf16 %v803, %v803
        %v827 = vpack.c.bf16 %v804, %v804
        %v828 = vpack.c.bf16 %v805, %v805
        %v829 = vpack.c.bf16 %v806, %v806
        %v830 = vpack.c.bf16 %v807, %v807
        %v831 = vpack.c.bf16 %v808, %v808
        %vm832 = vsmask.f32 4368
        %vm833 = vmor %vm810, %vm832
        %v835 = vshrl.u32 %v826, 16
        %v837 = vrot.slane %v835, 7
        %v838 = vshll.u32 %v826, 16
        %v840 = vor.u32 %v837, %v838
        %v841 = vrot.slane %v837, 4
        %v843 = vshrl.u32 %v827, 16
        %v845 = vrot.slane %v843, 7
        %v846 = vshll.u32 %v827, 16
        %v848 = vor.u32 %v845, %v846
        %v849 = vsel %vm833, %v841, %v848
        %v850 = vrot.slane %v845, 4
        %v852 = vshrl.u32 %v828, 16
        %v854 = vrot.slane %v852, 7
        %v855 = vshll.u32 %v828, 16
        %v857 = vor.u32 %v854, %v855
        %v858 = vsel %vm833, %v850, %v857
        %v859 = vrot.slane %v854, 4
        %v861 = vshrl.u32 %v829, 16
        %v863 = vrot.slane %v861, 7
        %v864 = vshll.u32 %v829, 16
        %v866 = vor.u32 %v863, %v864
        %v867 = vrot.slane %v863, 4
        %v869 = vshrl.u32 %v830, 16
        %v871 = vrot.slane %v869, 7
        %v872 = vshll.u32 %v830, 16
        %v874 = vor.u32 %v871, %v872
        %v875 = vsel %vm833, %v867, %v874
        %v876 = vrot.slane %v871, 4
        %v878 = vshrl.u32 %v831, 16
        %v880 = vrot.slane %v878, 7
        %v881 = vshll.u32 %v831, 16
        %v883 = vor.u32 %v880, %v881
        %v884 = vsel %vm833, %v876, %v883
        %v885 = vrot.slane %v880, 4
        %vm894 = vcmask 1043456
        %vm895 = vmand %vm894, %vm818
        %v896 = vld [vmem:[#allocation2] sm:$0xf]
        %v897 = vsel %vm895, %v840, %v896
        %898 = vst [vmem:[#allocation2] sm:$0xf] %v897
        %899 = vst [vmem:[#allocation2 + $0x4] sm:$0xf] %v849
        %900 = vst [vmem:[#allocation2 + $0x8] sm:$0xf] %v858
        %v901 = vld [vmem:[#allocation2 + $0xc] sm:$0x1]
        %v902 = vsel %vm811, %v859, %v901
        %903 = vst [vmem:[#allocation2 + $0xc] sm:$0x1] %v902
        %v904 = vld [vmem:[#allocation2 + $0x10] sm:$0xf]
        %v905 = vsel %vm895, %v866, %v904
        %906 = vst [vmem:[#allocation2 + $0x10] sm:$0xf] %v905
        %907 = vst [vmem:[#allocation2 + $0x14] sm:$0xf] %v875
        %908 = vst [vmem:[#allocation2 + $0x18] sm:$0xf] %v884
        %v909 = vld [vmem:[#allocation2 + $0x1c] sm:$0x1]
        %v910 = vsel %vm811, %v885, %v909
        %911 = vst [vmem:[#allocation2 + $0x1c] sm:$0x1] %v910
        %v912 = vld [vmem:[#allocation2] sm:$0xf]
        %v913 = vld [vmem:[#allocation2 + $0x4] sm:$0xf]
        %v914 = vld [vmem:[#allocation2 + $0x8] sm:$0xf]
        %v915 = vld [vmem:[#allocation2 + $0x10] sm:$0xf]
        %v916 = vld [vmem:[#allocation2 + $0x14] sm:$0xf]
        %v917 = vld [vmem:[#allocation2 + $0x18] sm:$0xf]
        %v918 = vld [vmem:[%s2] sm:$0xf]
        %v919 = vld [vmem:[%s2 + $0x4] sm:$0xf]
        %v920 = vld [vmem:[%s2 + $0x8] sm:$0xf]
        %v921 = vld [vmem:[%s2 + $0xc] sm:$0xf]
        %v922 = vld [vmem:[%s2 + $0x10] sm:$0xf]
        %v923 = vld [vmem:[%s2 + $0x14] sm:$0xf]
        %v924 = vld [vmem:[%s2 + $0x18] sm:$0xf]
        %v925 = vld [vmem:[%s2 + $0x1c] sm:$0xf]
        %v926 = vld [vmem:[%s2 + $0x20] sm:$0xf]
        %v927 = vld [vmem:[%s2 + $0x24] sm:$0xf]
        %v928 = vld [vmem:[%s2 + $0x28] sm:$0xf]
        %v929 = vld [vmem:[%s2 + $0x2c] sm:$0xf]
        %v930 = vld [vmem:[%s2 + $0x30] sm:$0xf]
        %v931 = vld [vmem:[%s2 + $0x34] sm:$0xf]
        %v932 = vld [vmem:[%s2 + $0x38] sm:$0xf]
        %v933 = vld [vmem:[%s2 + $0x3c] sm:$0xf]
        %v934 = vld [vmem:[#allocation2 + $0xc] sm:$0x1]
        %v935 = vld [vmem:[#allocation2 + $0x1c] sm:$0x1]
        %v937 = vshrl.u32 %v912, 16
        %v939 = vrot.slane %v937, 4
        %v940 = vshll.u32 %v912, 16
        %v942 = vrot.slane %v940, 5
        %v943 = vor.u32 %v939, %v942
        %v944 = vrot.slane %v943, 4
        %v946 = vshll.u32 %v913, 16
        %v948 = vrot.slane %v946, 5
        %v949 = vsel %vm391, %v944, %v948
        %v950 = vshrl.u32 %v913, 16
        %v952 = vrot.slane %v950, 4
        %v953 = vor.u32 %v952, %v948
        %v954 = vrot.slane %v953, 4
        %v956 = vshll.u32 %v914, 16
        %v958 = vrot.slane %v956, 5
        %v959 = vsel %vm391, %v954, %v958
        %v960 = vshrl.u32 %v914, 16
        %v962 = vrot.slane %v960, 4
        %v963 = vor.u32 %v962, %v958
        %v964 = vrot.slane %v963, 4
        %v966 = vshll.u32 %v934, 16
        %v968 = vrot.slane %v966, 5
        %v969 = vsel %vm391, %v964, %v968
        %v971 = vshrl.u32 %v915, 16
        %v973 = vrot.slane %v971, 4
        %v974 = vshll.u32 %v915, 16
        %v976 = vrot.slane %v974, 5
        %v977 = vor.u32 %v973, %v976
        %v978 = vrot.slane %v977, 4
        %v980 = vshll.u32 %v916, 16
        %v982 = vrot.slane %v980, 5
        %v983 = vsel %vm391, %v978, %v982
        %v984 = vshrl.u32 %v916, 16
        %v986 = vrot.slane %v984, 4
        %v987 = vor.u32 %v986, %v982
        %v988 = vrot.slane %v987, 4
        %v990 = vshll.u32 %v917, 16
        %v992 = vrot.slane %v990, 5
        %v993 = vsel %vm391, %v988, %v992
        %v994 = vshrl.u32 %v917, 16
        %v996 = vrot.slane %v994, 4
        %v997 = vor.u32 %v996, %v992
        %v998 = vrot.slane %v997, 4
        %v1000 = vshll.u32 %v935, 16
        %v1002 = vrot.slane %v1000, 5
        %v1003 = vsel %vm391, %v998, %v1002
        %s1004 = scalar_lea.vmem %s2, 64
        %v1005 = vld [vmem:[%s1004] sm:$0xf]
        %v1006 = vld [vmem:[%s1004 + $0x4] sm:$0xf]
        %v1007 = vld [vmem:[%s1004 + $0x8] sm:$0xf]
        %v1008 = vld [vmem:[%s1004 + $0xc] sm:$0xf]
        %v1009 = vld [vmem:[%s1004 + $0x10] sm:$0xf]
        %v1010 = vld [vmem:[%s1004 + $0x14] sm:$0xf]
        %v1011 = vld [vmem:[%s1004 + $0x18] sm:$0xf]
        %v1012 = vld [vmem:[%s1004 + $0x1c] sm:$0xf]
        %v1013 = vld [vmem:[%s1004 + $0x20] sm:$0xf]
        %v1014 = vld [vmem:[%s1004 + $0x24] sm:$0xf]
        %v1015 = vld [vmem:[%s1004 + $0x28] sm:$0xf]
        %v1016 = vld [vmem:[%s1004 + $0x2c] sm:$0xf]
        %v1017 = vld [vmem:[%s1004 + $0x30] sm:$0xf]
        %v1018 = vld [vmem:[%s1004 + $0x34] sm:$0xf]
        %v1019 = vld [vmem:[%s1004 + $0x38] sm:$0xf]
        %v1020 = vld [vmem:[%s1004 + $0x3c] sm:$0xf]
        %v1021 = vunpack.c.l.b16 %v949
        %v1022 = vunpack.c.l.b16 %v959
        %v1023 = vunpack.c.l.b16 %v969
        %v1024 = vunpack.c.l.b16 %v983
        %v1025 = vunpack.c.l.b16 %v993
        %v1026 = vunpack.c.l.b16 %v1003
        %v1027 = vpack.c.b16 %v1022, %v1021
        %v1028 = vpack.c.b16 %v1024, %v1023
        %v1029 = vpack.c.b16 %v1026, %v1025
        %v1049 = vunpack.c.l.b16 %v1005
        %v1050 = vunpack.c.l.b16 %v1006
        %v1051 = vunpack.c.l.b16 %v1007
        %v1052 = vunpack.c.l.b16 %v1008
        %v1053 = vunpack.c.l.b16 %v1009
        %v1054 = vunpack.c.l.b16 %v1010
        %v1055 = vunpack.c.l.b16 %v1011
        %v1056 = vunpack.c.l.b16 %v1012
        %v1057 = vunpack.c.l.b16 %v1013
        %v1058 = vunpack.c.l.b16 %v1014
        %v1059 = vunpack.c.l.b16 %v1015
        %v1060 = vunpack.c.l.b16 %v1016
        %v1061 = vunpack.c.l.b16 %v1017
        %v1062 = vunpack.c.l.b16 %v1018
        %v1063 = vunpack.c.l.b16 %v1019
        %v1064 = vunpack.c.l.b16 %v1020
        %v1065 = vpack.c.b16 %v1050, %v1049
        %v1066 = vpack.c.b16 %v1052, %v1051
        %v1067 = vpack.c.b16 %v1054, %v1053
        %v1068 = vpack.c.b16 %v1056, %v1055
        %v1069 = vpack.c.b16 %v1058, %v1057
        %v1070 = vpack.c.b16 %v1060, %v1059
        %v1071 = vpack.c.b16 %v1062, %v1061
        %v1072 = vpack.c.b16 %v1064, %v1063
        %1081 = vmatpush.bf16.msra.mxu0 %v1072
        %1082 = vmatpush.bf16.msra.mxu0 %v1071
        %1083 = vmatpush.bf16.msra.mxu0 %v1070
        %1084 = vmatpush.bf16.msra.mxu0 %v1069
        %1085 = vmatpush.bf16.msra.mxu0 %v1068
        %1086 = vmatpush.bf16.msra.mxu0 %v1067
        %1087 = vmatpush.bf16.msra.mxu0 %v1066
        %1088 = vmatpush.bf16.msra.mxu0 %v1065
        %1089 = vmatmul.bf16.gmra.mxu0 %v1027
        %v1090 = vpop.f32.mrf.mxu0
        %v1091 = vadd.f32 0.0, %v1090
        %v1092 = vpop.f32.mrf.mxu0
        %v1093 = vadd.f32 0.0, %v1092
        %1094 = vmatmul.bf16.gmra.mxu0 %v1028
        %v1095 = vpop.f32.mrf.mxu0
        %v1096 = vadd.f32 0.0, %v1095
        %v1097 = vpop.f32.mrf.mxu0
        %v1098 = vadd.f32 0.0, %v1097
        %1099 = vmatmul.bf16.gmra.mxu0 %v1029
        %v1100 = vpop.f32.mrf.mxu0
        %v1101 = vadd.f32 0.0, %v1100
        %v1102 = vpop.f32.mrf.mxu0
        %v1103 = vadd.f32 0.0, %v1102
        %1104 = vdwg.mxu0
        %v1111 = vunpack.c.l.b16 %v912
        %v1112 = vunpack.c.l.b16 %v913
        %v1113 = vunpack.c.l.b16 %v914
        %v1114 = vunpack.c.l.b16 %v915
        %v1115 = vunpack.c.l.b16 %v916
        %v1116 = vunpack.c.l.b16 %v917
        %v1117 = vpack.c.b16 %v1112, %v1111
        %v1118 = vpack.c.b16 %v1114, %v1113
        %v1119 = vpack.c.b16 %v1116, %v1115
        %v1139 = vunpack.c.l.b16 %v918
        %v1140 = vunpack.c.l.b16 %v919
        %v1141 = vunpack.c.l.b16 %v920
        %v1142 = vunpack.c.l.b16 %v921
        %v1143 = vunpack.c.l.b16 %v922
        %v1144 = vunpack.c.l.b16 %v923
        %v1145 = vunpack.c.l.b16 %v924
        %v1146 = vunpack.c.l.b16 %v925
        %v1147 = vunpack.c.l.b16 %v926
        %v1148 = vunpack.c.l.b16 %v927
        %v1149 = vunpack.c.l.b16 %v928
        %v1150 = vunpack.c.l.b16 %v929
        %v1151 = vunpack.c.l.b16 %v930
        %v1152 = vunpack.c.l.b16 %v931
        %v1153 = vunpack.c.l.b16 %v932
        %v1154 = vunpack.c.l.b16 %v933
        %v1155 = vpack.c.b16 %v1140, %v1139
        %v1156 = vpack.c.b16 %v1142, %v1141
        %v1157 = vpack.c.b16 %v1144, %v1143
        %v1158 = vpack.c.b16 %v1146, %v1145
        %v1159 = vpack.c.b16 %v1148, %v1147
        %v1160 = vpack.c.b16 %v1150, %v1149
        %v1161 = vpack.c.b16 %v1152, %v1151
        %v1162 = vpack.c.b16 %v1154, %v1153
        %1171 = vmatpush.bf16.msra.mxu0 %v1162
        %1172 = vmatpush.bf16.msra.mxu0 %v1161
        %1173 = vmatpush.bf16.msra.mxu0 %v1160
        %1174 = vmatpush.bf16.msra.mxu0 %v1159
        %1175 = vmatpush.bf16.msra.mxu0 %v1158
        %1176 = vmatpush.bf16.msra.mxu0 %v1157
        %1177 = vmatpush.bf16.msra.mxu0 %v1156
        %1178 = vmatpush.bf16.msra.mxu0 %v1155
        %1179 = vmatmul.bf16.gmra.mxu0 %v1117
        %v1180 = vpop.f32.mrf.mxu0
        %v1181 = vadd.f32 %v1091, %v1180
        %v1182 = vpop.f32.mrf.mxu0
        %v1183 = vadd.f32 %v1093, %v1182
        %1184 = vmatmul.bf16.gmra.mxu0 %v1118
        %v1185 = vpop.f32.mrf.mxu0
        %v1186 = vadd.f32 %v1096, %v1185
        %v1187 = vpop.f32.mrf.mxu0
        %v1188 = vadd.f32 %v1098, %v1187
        %1189 = vmatmul.bf16.gmra.mxu0 %v1119
        %v1190 = vpop.f32.mrf.mxu0
        %v1191 = vadd.f32 %v1101, %v1190
        %v1192 = vpop.f32.mrf.mxu0
        %v1193 = vadd.f32 %v1103, %v1192
        %1194 = vdwg.mxu0
        %v1195 = vld [vmem:[#allocation2] sm:$0xe]
        %v1196 = vld [vmem:[#allocation2 + $0x10] sm:$0xe]
        %v1201 = vrot.slane %v1195, 5
        %v1202 = vrot.slane %v1201, 4
        %v1203 = vrot.slane %v913, 5
        %v1204 = vsel %vm655, %v1202, %v1203
        %v1205 = vrot.slane %v1203, 4
        %v1206 = vrot.slane %v914, 5
        %v1207 = vsel %vm655, %v1205, %v1206
        %v1208 = vrot.slane %v1206, 4
        %v1209 = vrot.slane %v934, 5
        %v1210 = vsel %vm655, %v1208, %v1209
        %v1211 = vrot.slane %v1196, 5
        %v1212 = vrot.slane %v1211, 4
        %v1213 = vrot.slane %v916, 5
        %v1214 = vsel %vm655, %v1212, %v1213
        %v1215 = vrot.slane %v1213, 4
        %v1216 = vrot.slane %v917, 5
        %v1217 = vsel %vm655, %v1215, %v1216
        %v1218 = vrot.slane %v1216, 4
        %v1219 = vrot.slane %v935, 5
        %v1220 = vsel %vm655, %v1218, %v1219
        %s1221 = scalar_lea.vmem %s2, 128
        %v1222 = vld [vmem:[%s1221] sm:$0xf]
        %v1223 = vld [vmem:[%s1221 + $0x4] sm:$0xf]
        %v1224 = vld [vmem:[%s1221 + $0x8] sm:$0xf]
        %v1225 = vld [vmem:[%s1221 + $0xc] sm:$0xf]
        %v1226 = vld [vmem:[%s1221 + $0x10] sm:$0xf]
        %v1227 = vld [vmem:[%s1221 + $0x14] sm:$0xf]
        %v1228 = vld [vmem:[%s1221 + $0x18] sm:$0xf]
        %v1229 = vld [vmem:[%s1221 + $0x1c] sm:$0xf]
        %v1230 = vld [vmem:[%s1221 + $0x20] sm:$0xf]
        %v1231 = vld [vmem:[%s1221 + $0x24] sm:$0xf]
        %v1232 = vld [vmem:[%s1221 + $0x28] sm:$0xf]
        %v1233 = vld [vmem:[%s1221 + $0x2c] sm:$0xf]
        %v1234 = vld [vmem:[%s1221 + $0x30] sm:$0xf]
        %v1235 = vld [vmem:[%s1221 + $0x34] sm:$0xf]
        %v1236 = vld [vmem:[%s1221 + $0x38] sm:$0xf]
        %v1237 = vld [vmem:[%s1221 + $0x3c] sm:$0xf]
        %v1238 = vunpack.c.l.b16 %v1204
        %v1239 = vunpack.c.l.b16 %v1207
        %v1240 = vunpack.c.l.b16 %v1210
        %v1241 = vunpack.c.l.b16 %v1214
        %v1242 = vunpack.c.l.b16 %v1217
        %v1243 = vunpack.c.l.b16 %v1220
        %v1244 = vpack.c.b16 %v1239, %v1238
        %v1245 = vpack.c.b16 %v1241, %v1240
        %v1246 = vpack.c.b16 %v1243, %v1242
        %v1266 = vunpack.c.l.b16 %v1222
        %v1267 = vunpack.c.l.b16 %v1223
        %v1268 = vunpack.c.l.b16 %v1224
        %v1269 = vunpack.c.l.b16 %v1225
        %v1270 = vunpack.c.l.b16 %v1226
        %v1271 = vunpack.c.l.b16 %v1227
        %v1272 = vunpack.c.l.b16 %v1228
        %v1273 = vunpack.c.l.b16 %v1229
        %v1274 = vunpack.c.l.b16 %v1230
        %v1275 = vunpack.c.l.b16 %v1231
        %v1276 = vunpack.c.l.b16 %v1232
        %v1277 = vunpack.c.l.b16 %v1233
        %v1278 = vunpack.c.l.b16 %v1234
        %v1279 = vunpack.c.l.b16 %v1235
        %v1280 = vunpack.c.l.b16 %v1236
        %v1281 = vunpack.c.l.b16 %v1237
        %v1282 = vpack.c.b16 %v1267, %v1266
        %v1283 = vpack.c.b16 %v1269, %v1268
        %v1284 = vpack.c.b16 %v1271, %v1270
        %v1285 = vpack.c.b16 %v1273, %v1272
        %v1286 = vpack.c.b16 %v1275, %v1274
        %v1287 = vpack.c.b16 %v1277, %v1276
        %v1288 = vpack.c.b16 %v1279, %v1278
        %v1289 = vpack.c.b16 %v1281, %v1280
        %1298 = vmatpush.bf16.msra.mxu0 %v1289
        %1299 = vmatpush.bf16.msra.mxu0 %v1288
        %1300 = vmatpush.bf16.msra.mxu0 %v1287
        %1301 = vmatpush.bf16.msra.mxu0 %v1286
        %1302 = vmatpush.bf16.msra.mxu0 %v1285
        %1303 = vmatpush.bf16.msra.mxu0 %v1284
        %1304 = vmatpush.bf16.msra.mxu0 %v1283
        %1305 = vmatpush.bf16.msra.mxu0 %v1282
        %1306 = vmatmul.bf16.gmra.mxu0 %v1244
        %v1307 = vpop.f32.mrf.mxu0
        %v1308 = vadd.f32 0.0, %v1307
        %v1309 = vpop.f32.mrf.mxu0
        %v1310 = vadd.f32 0.0, %v1309
        %1311 = vmatmul.bf16.gmra.mxu0 %v1245
        %v1312 = vpop.f32.mrf.mxu0
        %v1313 = vadd.f32 0.0, %v1312
        %v1314 = vpop.f32.mrf.mxu0
        %v1315 = vadd.f32 0.0, %v1314
        %1316 = vmatmul.bf16.gmra.mxu0 %v1246
        %v1317 = vpop.f32.mrf.mxu0
        %v1318 = vadd.f32 0.0, %v1317
        %v1319 = vpop.f32.mrf.mxu0
        %v1320 = vadd.f32 0.0, %v1319
        %1321 = vdwg.mxu0
        %v1322 = vadd.f32 %v1181, %v1308
        %v1323 = vadd.f32 %v1183, %v1310
        %v1324 = vadd.f32 %v1186, %v1313
        %v1325 = vadd.f32 %v1188, %v1315
        %v1326 = vadd.f32 %v1191, %v1318
        %v1327 = vadd.f32 %v1193, %v1320
        %vm1336 = vcmask 1046528
        %v1337 = vrot.slane %v292, 1
        %v1338 = vrot.slane %v293, 1
        %v1339 = vsel %vm1336, %v1337, %v1338
        %v1340 = vrot.slane %v294, 1
        %v1341 = vsel %vm1336, %v1338, %v1340
        %v1342 = vrot.slane %v295, 1
        %v1343 = vsel %vm1336, %v1340, %v1342
        %v1344 = vrot.slane %v296, 1
        %v1345 = vrot.slane %v297, 1
        %v1346 = vsel %vm1336, %v1344, %v1345
        %v1347 = vrot.slane %v298, 1
        %v1348 = vsel %vm1336, %v1345, %v1347
        %v1349 = vrot.slane %v299, 1
        %v1350 = vsel %vm1336, %v1347, %v1349
        %v1357 = vadd.f32 %v1322, %v1339
        %v1358 = vadd.f32 %v1323, %v1341
        %v1359 = vadd.f32 %v1324, %v1343
        %v1360 = vadd.f32 %v1325, %v1346
        %v1361 = vadd.f32 %v1326, %v1348
        %v1362 = vadd.f32 %v1327, %v1350
        %v1363 = vpack.c.bf16 %v1357, %v1357
        %v1364 = vpack.c.bf16 %v1358, %v1358
        %v1365 = vpack.c.bf16 %v1359, %v1359
        %v1366 = vpack.c.bf16 %v1360, %v1360
        %v1367 = vpack.c.bf16 %v1361, %v1361
        %v1368 = vpack.c.bf16 %v1362, %v1362
        %1369 = vst [vmem:[%s274] sm:$0xf] %v1363
        %1370 = vst [vmem:[%s274 + $0x4] sm:$0xf] %v1364
        %1371 = vst [vmem:[%s274 + $0x8] sm:$0xf] %v1365
        %1372 = vst [vmem:[%s274 + $0xc] sm:$0xf] %v1366
        %1373 = vst [vmem:[%s274 + $0x10] sm:$0xf] %v1367
        %1374 = vst [vmem:[%s274 + $0x14] sm:$0xf] %v1368
        %s1375 = sand.u32 %s181, 1
        %s1376 = scalar_lea.sflag [#allocation4], %s1375
        %s1377 = sand.u32 %s181, 1
        %s1378 = smul.addr %s1377, 24
        %s1379 = scalar_lea.vmem [#allocation3], %s1378
        // Predicated region
        $region49: #{tpu_custom_call.1} parent=47 // pred_check
          %p1380 = pneg %p191
        $region50: #{tpu_custom_call.1} parent=47 // pred_check_branch
          %1382 = sbr.rel (%p1380) target = $region52
        $region51: #{tpu_custom_call.1} parent=47 // pred_region
          %s1383 = smul.u32 2, %s21
          %1385 = vsyncadd %s1376, 0
          %s1386 = smul.addr %s1383, 3
          %s1387 = smul.addr %s1386, 4
          %s1388 = scalar_lea.hbm %s7, %s1387
          %s1389 = sshll.u32 %s1379, 4
          %s1390 = int_to_ptr.vmem [resolvable:$true] %s1389
          %s1391 = sshll.u32 %s1388, 4
          %s1392 = int_to_ptr.hbm [resolvable:$true] %s1391
          %1397 = dma.vmem_to_hbm [thread:$0]  %s1390, 384, %s1392, %s1376, 64, 64, 4
        $region52: #{tpu_custom_call.1} parent=47 // pred_fallthru
          _
      $region48: #{tpu_custom_call.1} parent=5 // pred_fallthru
        _
      %p1398 = scmp.le.s32.totalorder 2, %s16
      // Predicated region
      $region53: #{tpu_custom_call.1} parent=5 // pred_check
        %p1399 = pneg %p1398
      $region54: #{tpu_custom_call.1} parent=5 // pred_check_branch
        %1401 = sbr.rel (%p1399) target = $region56
      $region55: #{tpu_custom_call.1} parent=5 // pred_region
        %s1402 = ssub.s32 %s16, 2
        // Predicated region
        $region57: #{tpu_custom_call.1} parent=55 // pred_check
          %p1403 = pneg %p197
        $region58: #{tpu_custom_call.1} parent=55 // pred_check_branch
          %1405 = sbr.rel (%p1403) target = $region60
        $region59: #{tpu_custom_call.1} parent=55 // pred_region
          %s1406 = sand.u32 %s182, 1
          %s1407 = scalar_lea.sflag [#allocation4], %s1406
          %s1408 = sand.u32 %s182, 1
          %s1409 = smul.addr %s1408, 24
          %s1410 = scalar_lea.vmem [#allocation3], %s1409
          %1412 = dma.done %s1407, 384
        $region60: #{tpu_custom_call.1} parent=55 // pred_fallthru
          _
      $region56: #{tpu_custom_call.1} parent=5 // pred_fallthru
        _
    $region6: #{tpu_custom_call.1} parent=1 // loop_footer
      %s20 = sadd.s32 1, %s16
    $region7: #{tpu_custom_call.1} parent=1 // loop_footer_branch
      %15 = sbr.rel target = $region3
    $region8: #{tpu_custom_call.1} parent=1 // loop_exit
      _
    %1413 = vsyncpa [#allocation4], 1
    %s1414 = scalar_lea.sflag [#allocation4], 1
    %1415 = vsyncpa %s1414, 1

</llo_original>
